<compile_context>
chip_gen: v6e
topology: v6e:2x2x1
jax: 0.10.0
libtpu: 0.0.40
codegen_flags: <defaults>
</compile_context>

<pallas_src>
import functools

import jax
import jax.numpy as jnp
from jax.experimental import pallas as pl
from jax.experimental.pallas import tpu as pltpu

MEL_EMBED = 128   # mel_embed
DEC_HIDDEN = 256  # dec_hidden
N_EMBED = 256     # n_embed

PARAM_ORDER = ("w1", "b1", "w2", "b2", "w3", "b3")


def prenet_kernel(x_ref, w1_ref, b1_ref, w2_ref, b2_ref, w3_ref, b3_ref, o_ref,
                  *, compute_dtype):
    """Fused Transpose + (Linear,ReLU)x2 + Linear on one (mel, tt) tile of x.

    x_ref : (MEL_EMBED, tt)  tile of x in its native (B, mel, T) layout.
    o_ref : (tt, N_EMBED)    lane-dense output tile of the (B, T, n_embed) result.
    """
    # Layer 1: contract the mel axis of the un-transposed tile (transposed-LHS
    # matmul). f32 operands: the in-VMEM transpose this implies is the
    # best-supported 32-bit path, and w1 is tiny / VMEM-resident.
    x = x_ref[...].astype(jnp.float32)
    h = jax.lax.dot_general(
        x, w1_ref[...],
        dimension_numbers=(((0,), (0,)), ((), ())),
        preferred_element_type=jnp.float32)
    h = jnp.maximum(h + b1_ref[...], 0.0)

    # Layers 2 & 3: compute_dtype (default bf16) operands on the MXU, f32 accumulate.
    h = jnp.dot(h.astype(compute_dtype), w2_ref[...],
                preferred_element_type=jnp.float32)
    h = jnp.maximum(h + b2_ref[...], 0.0)

    o = jnp.dot(h.astype(compute_dtype), w3_ref[...],
                preferred_element_type=jnp.float32) + b3_ref[...]
    o_ref[...] = o.astype(o_ref.dtype)


def _pick_time_tile(T, B, block_t):
    """Largest T-tile that (a) satisfies the (8,128) lane constraint, (b) divides T
    exactly (no pad copy), and (c) leaves >= 2 grid steps when B == 1 so v7x's
    second TensorCore has work."""
    if T % 128 != 0:
        return T  # one full-T block (block dim equal to the full array dim is legal)
    tt = max(128, min(block_t, T) - (min(block_t, T) % 128))
    while T % tt:
        tt -= 128
    if B == 1 and tt == T and T >= 256:
        half = (T // 2) - ((T // 2) % 128)
        while half >= 128 and T % half:
            half -= 128
        if half >= 128:
            tt = half
    return tt


def decoder_prenet_forward(x, params, *, block_t=2048,
                           compute_dtype=jnp.bfloat16, out_dtype=None):
    """DecoderPreNet forward. x: (B, mel_embed, T) -> (B, T, n_embed)."""
    B, MEL, T = x.shape
    assert MEL == MEL_EMBED, f"mel dim must be {MEL_EMBED}, got {MEL}"
    out_dtype = x.dtype if out_dtype is None else out_dtype

    tt = _pick_time_tile(T, B, block_t)
    grid = (B, T // tt)

    # Weight layout is (in, out) = PyTorch Linear weight transposed; biases (1, out).
    w1 = params["w1"].astype(jnp.float32)       # f32: see layer-1 comment in kernel
    w2 = params["w2"].astype(compute_dtype)
    w3 = params["w3"].astype(compute_dtype)
    b1 = params["b1"].astype(jnp.float32)
    b2 = params["b2"].astype(jnp.float32)
    b3 = params["b3"].astype(jnp.float32)
    plist = [w1, b1, w2, b2, w3, b3]

    def run(single_buffer_weights):
        def wspec(arr):
            kwargs = {}
            if single_buffer_weights:
                # Constant index_map -> the tile never changes; one buffer suffices.
                kwargs = dict(pipeline_mode=pl.Buffered(1))
            return pl.BlockSpec(arr.shape, lambda b, t: (0, 0), **kwargs)

        return pl.pallas_call(
            functools.partial(prenet_kernel, compute_dtype=compute_dtype),
            out_shape=jax.ShapeDtypeStruct((B, T, N_EMBED), out_dtype),
            grid_spec=pltpu.PrefetchScalarGridSpec(
                num_scalar_prefetch=0,
                grid=grid,
                in_specs=[pl.BlockSpec((None, MEL_EMBED, tt),
                                       lambda b, t: (b, 0, t))]
                         + [wspec(p) for p in plist],
                out_specs=pl.BlockSpec((None, tt, N_EMBED),
                                       lambda b, t: (b, t, 0)),
            ),
            compiler_params=pltpu.CompilerParams(
                dimension_semantics=("parallel", "parallel"),
                vmem_limit_bytes=32 << 20),   # <= 32 MiB: safe on v5e/v6e/v7x
        )(x, *plist)

    try:
        return run(single_buffer_weights=True)
    except Exception:
        # pl.Buffered(1) / pipeline_mode not supported on this jax version.
        return run(single_buffer_weights=False)


def make_params(key):
    ks = jax.random.split(key, 6)

    def w(k, shape, scale=0.05):
        return (jax.random.normal(k, shape, jnp.float32) * scale).astype(jnp.float32)

    # Weights are stored as (in, out) = PyTorch Linear weight transposed.
    return dict(
        w1=w(ks[0], (MEL_EMBED, DEC_HIDDEN)), b1=w(ks[1], (1, DEC_HIDDEN)),
        w2=w(ks[2], (DEC_HIDDEN, DEC_HIDDEN)), b2=w(ks[3], (1, DEC_HIDDEN)),
        w3=w(ks[4], (DEC_HIDDEN, N_EMBED)),   b3=w(ks[5], (1, N_EMBED)),
    )


# ---------------- pure-JAX reference (for verification) ----------------
def reference(x, p):
    HI = jax.lax.Precision.HIGHEST
    xt = jnp.swapaxes(x, 1, 2)  # (B, T, mel_embed)
    h = jax.nn.relu(jnp.einsum("btm,md->btd", xt, p["w1"], precision=HI) + p["b1"])
    h = jax.nn.relu(jnp.einsum("btd,de->bte", h, p["w2"], precision=HI) + p["b2"])
    return jnp.einsum("bte,en->btn", h, p["w3"], precision=HI) + p["b3"]


if __name__ == "__main__":
    key = jax.random.PRNGKey(0)
    kx, kp, kx2 = jax.random.split(key, 3)
    params = make_params(kp)

    # Case 1: small module-sized input (B=2, mel=128, T=8).
    B, T = 2, 8
    x = jax.random.normal(kx, (B, MEL_EMBED, T), jnp.float32)
    ref = reference(x, params)

    out_f32 = jax.block_until_ready(
        decoder_prenet_forward(x, params, compute_dtype=jnp.float32))
    assert out_f32.shape == (B, T, N_EMBED)
    assert jnp.allclose(out_f32, ref, rtol=5e-3, atol=2e-3), "f32 path mismatch"

    out_bf16 = jax.block_until_ready(decoder_prenet_forward(x, params))
    assert out_bf16.shape == (B, T, N_EMBED)
    assert jnp.allclose(out_bf16, ref, rtol=3e-2, atol=3e-2), "bf16 path mismatch"

    # Case 2: exercise the tiled / megacore-split path (B=1, T=256 -> tt=128, 2 steps).
    B2, T2 = 1, 256
    x2 = jax.random.normal(kx2, (B2, MEL_EMBED, T2), jnp.float32)
    ref2 = reference(x2, params)
    out2 = jax.block_until_ready(decoder_prenet_forward(x2, params))
    assert out2.shape == (B2, T2, N_EMBED)
    assert jnp.allclose(out2, ref2, rtol=3e-2, atol=3e-2), "tiled path mismatch"

    print("KERNEL_OK")
</pallas_src>

<mosaic_0001>
module attributes {stable_mosaic.version = 11 : i64} {
  func.func @prenet_kernel(%arg0: i32, %arg1: i32, %arg2: memref<1x128x8xf32, #tpu.memory_space<vmem>>, %arg3: memref<128x256xf32, #tpu.memory_space<vmem>>, %arg4: memref<1x256xf32, #tpu.memory_space<vmem>>, %arg5: memref<256x256xf32, #tpu.memory_space<vmem>>, %arg6: memref<1x256xf32, #tpu.memory_space<vmem>>, %arg7: memref<256x256xf32, #tpu.memory_space<vmem>>, %arg8: memref<1x256xf32, #tpu.memory_space<vmem>>, %arg9: memref<1x8x256xf32, #tpu.memory_space<vmem>>) attributes {dimension_semantics = [#tpu.dimension_semantics<parallel>, #tpu.dimension_semantics<parallel>], iteration_bounds = array<i64: 2, 1>, scalar_prefetch = 0 : i64, scratch_operands = 0 : i64, tpu.core_type = #tpu.core_type<tc>, window_params = [{transform_indices = @transform_0, window_bounds = array<i64: 1, 128, 8>}, {pipeline_mode = #tpu.pipeline_mode<synchronous>, transform_indices = @transform_1, window_bounds = array<i64: 128, 256>}, {pipeline_mode = #tpu.pipeline_mode<synchronous>, transform_indices = @transform_2, window_bounds = array<i64: 1, 256>}, {pipeline_mode = #tpu.pipeline_mode<synchronous>, transform_indices = @transform_3, window_bounds = array<i64: 256, 256>}, {pipeline_mode = #tpu.pipeline_mode<synchronous>, transform_indices = @transform_4, window_bounds = array<i64: 1, 256>}, {pipeline_mode = #tpu.pipeline_mode<synchronous>, transform_indices = @transform_5, window_bounds = array<i64: 256, 256>}, {pipeline_mode = #tpu.pipeline_mode<synchronous>, transform_indices = @transform_6, window_bounds = array<i64: 1, 256>}, {transform_indices = @transform_7, window_bounds = array<i64: 1, 8, 256>}]} {
    %c0 = arith.constant 0 : index
    %c0_0 = arith.constant 0 : index
    %c0_1 = arith.constant 0 : index
    %0 = vector.load %arg2[%c0, %c0_0, %c0_1] : memref<1x128x8xf32, #tpu.memory_space<vmem>>, vector<1x128x8xf32>
    %1 = vector.shape_cast %0 : vector<1x128x8xf32> to vector<128x8xf32>
    %c0_2 = arith.constant 0 : index
    %c0_3 = arith.constant 0 : index
    %2 = vector.load %arg3[%c0_2, %c0_3] : memref<128x256xf32, #tpu.memory_space<vmem>>, vector<128x256xf32>
    %cst = arith.constant dense<0.000000e+00> : vector<8x256xf32>
    %3 = tpu.matmul %1, %2, %cst {dimension_numbers = #tpu.dot_dimension_numbers<[0], [0], [1], [1], [0, 1, 1, 1], [], []>} : vector<128x8xf32>, vector<128x256xf32>, vector<8x256xf32> -> vector<8x256xf32>
    %c0_4 = arith.constant 0 : index
    %c0_5 = arith.constant 0 : index
    %4 = vector.load %arg4[%c0_4, %c0_5] : memref<1x256xf32, #tpu.memory_space<vmem>>, vector<1x256xf32>
    %5 = vector.broadcast %4 : vector<1x256xf32> to vector<8x256xf32>
    %6 = arith.addf %3, %5 : vector<8x256xf32>
    %cst_6 = arith.constant 0.000000e+00 : f32
    %7 = vector.broadcast %cst_6 : f32 to vector<8x256xf32>
    %8 = arith.maximumf %6, %7 : vector<8x256xf32>
    %c0_7 = arith.constant 0 : index
    %c0_8 = arith.constant 0 : index
    %9 = vector.load %arg5[%c0_7, %c0_8] : memref<256x256xf32, #tpu.memory_space<vmem>>, vector<256x256xf32>
    %cst_9 = arith.constant dense<0.000000e+00> : vector<8x256xf32>
    %10 = tpu.matmul %8, %9, %cst_9 {dimension_numbers = #tpu.dot_dimension_numbers<[1], [0], [0], [1], [0, 0, 1, 1], [], []>} : vector<8x256xf32>, vector<256x256xf32>, vector<8x256xf32> -> vector<8x256xf32>
    %c0_10 = arith.constant 0 : index
    %c0_11 = arith.constant 0 : index
    %11 = vector.load %arg6[%c0_10, %c0_11] : memref<1x256xf32, #tpu.memory_space<vmem>>, vector<1x256xf32>
    %12 = vector.broadcast %11 : vector<1x256xf32> to vector<8x256xf32>
    %13 = arith.addf %10, %12 : vector<8x256xf32>
    %cst_12 = arith.constant 0.000000e+00 : f32
    %14 = vector.broadcast %cst_12 : f32 to vector<8x256xf32>
    %15 = arith.maximumf %13, %14 : vector<8x256xf32>
    %c0_13 = arith.constant 0 : index
    %c0_14 = arith.constant 0 : index
    %16 = vector.load %arg7[%c0_13, %c0_14] : memref<256x256xf32, #tpu.memory_space<vmem>>, vector<256x256xf32>
    %cst_15 = arith.constant dense<0.000000e+00> : vector<8x256xf32>
    %17 = tpu.matmul %15, %16, %cst_15 {dimension_numbers = #tpu.dot_dimension_numbers<[1], [0], [0], [1], [0, 0, 1, 1], [], []>} : vector<8x256xf32>, vector<256x256xf32>, vector<8x256xf32> -> vector<8x256xf32>
    %c0_16 = arith.constant 0 : index
    %c0_17 = arith.constant 0 : index
    %18 = vector.load %arg8[%c0_16, %c0_17] : memref<1x256xf32, #tpu.memory_space<vmem>>, vector<1x256xf32>
    %19 = vector.broadcast %18 : vector<1x256xf32> to vector<8x256xf32>
    %20 = arith.addf %17, %19 : vector<8x256xf32>
    %c0_18 = arith.constant 0 : index
    %c0_19 = arith.constant 0 : index
    %c0_20 = arith.constant 0 : index
    %21 = vector.load %arg9[%c0_18, %c0_19, %c0_20] : memref<1x8x256xf32, #tpu.memory_space<vmem>>, vector<1x8x256xf32>
    %22 = vector.shape_cast %21 : vector<1x8x256xf32> to vector<8x256xf32>
    %23 = vector.shape_cast %20 : vector<8x256xf32> to vector<1x8x256xf32>
    tpu.vector_store %arg9[%c0_18, %c0_19, %c0_20], %23 {strides = array<i32>} : memref<1x8x256xf32, #tpu.memory_space<vmem>>, vector<1x8x256xf32>,
    return
  }
  func.func @transform_0(%arg0: i32, %arg1: i32) -> (i32, i32, i32) {
    %c0_i32 = arith.constant 0 : i32
    %c0_i32_0 = arith.constant 0 : i32
    return %arg0, %c0_i32, %arg1 : i32, i32, i32
  }
  func.func @transform_1(%arg0: i32, %arg1: i32) -> (i32, i32) {
    %c0_i32 = arith.constant 0 : i32
    %c0_i32_0 = arith.constant 0 : i32
    %c0_i32_1 = arith.constant 0 : i32
    return %c0_i32, %c0_i32_0 : i32, i32
  }
  func.func @transform_2(%arg0: i32, %arg1: i32) -> (i32, i32) {
    %c0_i32 = arith.constant 0 : i32
    %c0_i32_0 = arith.constant 0 : i32
    %c0_i32_1 = arith.constant 0 : i32
    return %c0_i32, %c0_i32_0 : i32, i32
  }
  func.func @transform_3(%arg0: i32, %arg1: i32) -> (i32, i32) {
    %c0_i32 = arith.constant 0 : i32
    %c0_i32_0 = arith.constant 0 : i32
    %c0_i32_1 = arith.constant 0 : i32
    return %c0_i32, %c0_i32_0 : i32, i32
  }
  func.func @transform_4(%arg0: i32, %arg1: i32) -> (i32, i32) {
    %c0_i32 = arith.constant 0 : i32
    %c0_i32_0 = arith.constant 0 : i32
    %c0_i32_1 = arith.constant 0 : i32
    return %c0_i32, %c0_i32_0 : i32, i32
  }
  func.func @transform_5(%arg0: i32, %arg1: i32) -> (i32, i32) {
    %c0_i32 = arith.constant 0 : i32
    %c0_i32_0 = arith.constant 0 : i32
    %c0_i32_1 = arith.constant 0 : i32
    return %c0_i32, %c0_i32_0 : i32, i32
  }
  func.func @transform_6(%arg0: i32, %arg1: i32) -> (i32, i32) {
    %c0_i32 = arith.constant 0 : i32
    %c0_i32_0 = arith.constant 0 : i32
    %c0_i32_1 = arith.constant 0 : i32
    return %c0_i32, %c0_i32_0 : i32, i32
  }
  func.func @transform_7(%arg0: i32, %arg1: i32) -> (i32, i32, i32) {
    %c0_i32 = arith.constant 0 : i32
    %c0_i32_0 = arith.constant 0 : i32
    return %arg0, %arg1, %c0_i32 : i32, i32, i32
  }
}

module attributes {stable_mosaic.version = 11 : i64} {
  func.func @prenet_kernel(%arg0: i32, %arg1: i32, %arg2: memref<1x128x8xf32, #tpu.memory_space<vmem>>, %arg3: memref<128x256xf32, #tpu.memory_space<vmem>>, %arg4: memref<1x256xf32, #tpu.memory_space<vmem>>, %arg5: memref<256x256xf32, #tpu.memory_space<vmem>>, %arg6: memref<1x256xf32, #tpu.memory_space<vmem>>, %arg7: memref<256x256xf32, #tpu.memory_space<vmem>>, %arg8: memref<1x256xf32, #tpu.memory_space<vmem>>, %arg9: memref<1x8x256xf32, #tpu.memory_space<vmem>>) attributes {dimension_semantics = [#tpu.dimension_semantics<parallel>, #tpu.dimension_semantics<parallel>], iteration_bounds = array<i64: 2, 1>, scalar_prefetch = 0 : i64, scratch_operands = 0 : i64, tpu.core_type = #tpu.core_type<tc>, window_params = [{transform_indices = @transform_0, window_bounds = array<i64: 1, 128, 8>}, {pipeline_mode = #tpu.pipeline_mode<synchronous>, transform_indices = @transform_1, window_bounds = array<i64: 128, 256>}, {pipeline_mode = #tpu.pipeline_mode<synchronous>, transform_indices = @transform_2, window_bounds = array<i64: 1, 256>}, {pipeline_mode = #tpu.pipeline_mode<synchronous>, transform_indices = @transform_3, window_bounds = array<i64: 256, 256>}, {pipeline_mode = #tpu.pipeline_mode<synchronous>, transform_indices = @transform_4, window_bounds = array<i64: 1, 256>}, {pipeline_mode = #tpu.pipeline_mode<synchronous>, transform_indices = @transform_5, window_bounds = array<i64: 256, 256>}, {pipeline_mode = #tpu.pipeline_mode<synchronous>, transform_indices = @transform_6, window_bounds = array<i64: 1, 256>}, {transform_indices = @transform_7, window_bounds = array<i64: 1, 8, 256>}]} {
    %c0 = arith.constant 0 : index
    %c0_0 = arith.constant 0 : index
    %c0_1 = arith.constant 0 : index
    %0 = vector.load %arg2[%c0, %c0_0, %c0_1] : memref<1x128x8xf32, #tpu.memory_space<vmem>>, vector<1x128x8xf32>
    %1 = vector.shape_cast %0 : vector<1x128x8xf32> to vector<128x8xf32>
    %c0_2 = arith.constant 0 : index
    %c0_3 = arith.constant 0 : index
    %2 = vector.load %arg3[%c0_2, %c0_3] : memref<128x256xf32, #tpu.memory_space<vmem>>, vector<128x256xf32>
    %cst = arith.constant dense<0.000000e+00> : vector<8x256xf32>
    %3 = tpu.matmul %1, %2, %cst {dimension_numbers = #tpu.dot_dimension_numbers<[0], [0], [1], [1], [0, 1, 1, 1], [], []>} : vector<128x8xf32>, vector<128x256xf32>, vector<8x256xf32> -> vector<8x256xf32>
    %c0_4 = arith.constant 0 : index
    %c0_5 = arith.constant 0 : index
    %4 = vector.load %arg4[%c0_4, %c0_5] : memref<1x256xf32, #tpu.memory_space<vmem>>, vector<1x256xf32>
    %5 = vector.broadcast %4 : vector<1x256xf32> to vector<8x256xf32>
    %6 = arith.addf %3, %5 : vector<8x256xf32>
    %cst_6 = arith.constant 0.000000e+00 : f32
    %7 = vector.broadcast %cst_6 : f32 to vector<8x256xf32>
    %8 = arith.maximumf %6, %7 : vector<8x256xf32>
    %c0_7 = arith.constant 0 : index
    %c0_8 = arith.constant 0 : index
    %9 = vector.load %arg5[%c0_7, %c0_8] : memref<256x256xf32, #tpu.memory_space<vmem>>, vector<256x256xf32>
    %cst_9 = arith.constant dense<0.000000e+00> : vector<8x256xf32>
    %10 = tpu.matmul %8, %9, %cst_9 {dimension_numbers = #tpu.dot_dimension_numbers<[1], [0], [0], [1], [0, 0, 1, 1], [], []>} : vector<8x256xf32>, vector<256x256xf32>, vector<8x256xf32> -> vector<8x256xf32>
    %c0_10 = arith.constant 0 : index
    %c0_11 = arith.constant 0 : index
    %11 = vector.load %arg6[%c0_10, %c0_11] : memref<1x256xf32, #tpu.memory_space<vmem>>, vector<1x256xf32>
    %12 = vector.broadcast %11 : vector<1x256xf32> to vector<8x256xf32>
    %13 = arith.addf %10, %12 : vector<8x256xf32>
    %cst_12 = arith.constant 0.000000e+00 : f32
    %14 = vector.broadcast %cst_12 : f32 to vector<8x256xf32>
    %15 = arith.maximumf %13, %14 : vector<8x256xf32>
    %c0_13 = arith.constant 0 : index
    %c0_14 = arith.constant 0 : index
    %16 = vector.load %arg7[%c0_13, %c0_14] : memref<256x256xf32, #tpu.memory_space<vmem>>, vector<256x256xf32>
    %cst_15 = arith.constant dense<0.000000e+00> : vector<8x256xf32>
    %17 = tpu.matmul %15, %16, %cst_15 {dimension_numbers = #tpu.dot_dimension_numbers<[1], [0], [0], [1], [0, 0, 1, 1], [], []>} : vector<8x256xf32>, vector<256x256xf32>, vector<8x256xf32> -> vector<8x256xf32>
    %c0_16 = arith.constant 0 : index
    %c0_17 = arith.constant 0 : index
    %18 = vector.load %arg8[%c0_16, %c0_17] : memref<1x256xf32, #tpu.memory_space<vmem>>, vector<1x256xf32>
    %19 = vector.broadcast %18 : vector<1x256xf32> to vector<8x256xf32>
    %20 = arith.addf %17, %19 : vector<8x256xf32>
    %c0_18 = arith.constant 0 : index
    %c0_19 = arith.constant 0 : index
    %c0_20 = arith.constant 0 : index
    %21 = vector.load %arg9[%c0_18, %c0_19, %c0_20] : memref<1x8x256xf32, #tpu.memory_space<vmem>>, vector<1x8x256xf32>
    %22 = vector.shape_cast %21 : vector<1x8x256xf32> to vector<8x256xf32>
    %23 = vector.shape_cast %20 : vector<8x256xf32> to vector<1x8x256xf32>
    tpu.vector_store %arg9[%c0_18, %c0_19, %c0_20], %23 {strides = array<i32>} : memref<1x8x256xf32, #tpu.memory_space<vmem>>, vector<1x8x256xf32>,
    return
  }
  func.func @transform_0(%arg0: i32, %arg1: i32) -> (i32, i32, i32) {
    %c0_i32 = arith.constant 0 : i32
    %c0_i32_0 = arith.constant 0 : i32
    return %arg0, %c0_i32, %arg1 : i32, i32, i32
  }
  func.func @transform_1(%arg0: i32, %arg1: i32) -> (i32, i32) {
    %c0_i32 = arith.constant 0 : i32
    %c0_i32_0 = arith.constant 0 : i32
    %c0_i32_1 = arith.constant 0 : i32
    return %c0_i32, %c0_i32_0 : i32, i32
  }
  func.func @transform_2(%arg0: i32, %arg1: i32) -> (i32, i32) {
    %c0_i32 = arith.constant 0 : i32
    %c0_i32_0 = arith.constant 0 : i32
    %c0_i32_1 = arith.constant 0 : i32
    return %c0_i32, %c0_i32_0 : i32, i32
  }
  func.func @transform_3(%arg0: i32, %arg1: i32) -> (i32, i32) {
    %c0_i32 = arith.constant 0 : i32
    %c0_i32_0 = arith.constant 0 : i32
    %c0_i32_1 = arith.constant 0 : i32
    return %c0_i32, %c0_i32_0 : i32, i32
  }
  func.func @transform_4(%arg0: i32, %arg1: i32) -> (i32, i32) {
    %c0_i32 = arith.constant 0 : i32
    %c0_i32_0 = arith.constant 0 : i32
    %c0_i32_1 = arith.constant 0 : i32
    return %c0_i32, %c0_i32_0 : i32, i32
  }
  func.func @transform_5(%arg0: i32, %arg1: i32) -> (i32, i32) {
    %c0_i32 = arith.constant 0 : i32
    %c0_i32_0 = arith.constant 0 : i32
    %c0_i32_1 = arith.constant 0 : i32
    return %c0_i32, %c0_i32_0 : i32, i32
  }
  func.func @transform_6(%arg0: i32, %arg1: i32) -> (i32, i32) {
    %c0_i32 = arith.constant 0 : i32
    %c0_i32_0 = arith.constant 0 : i32
    %c0_i32_1 = arith.constant 0 : i32
    return %c0_i32, %c0_i32_0 : i32, i32
  }
  func.func @transform_7(%arg0: i32, %arg1: i32) -> (i32, i32, i32) {
    %c0_i32 = arith.constant 0 : i32
    %c0_i32_0 = arith.constant 0 : i32
    return %arg0, %arg1, %c0_i32 : i32, i32, i32
  }
}

</mosaic_0001>

<llo_original>
// kernel: tpu_custom_call.1
$region0: #{tpu_custom_call.1}
  #allocation0 [shape = 'u32[]', space=smem, size = 0x4, offset = 0x4, fixed_abs, tag = 'smem constant byte address 0x4 - core index']
  #allocation1 [shape = 'u32[144,128]{1,0:T(1,128)}', space=vmem, size = 0x12000, scoped, tag = 'internal scratch']
  %s0 = inlined_call_operand.vmem [shape: f32[2,128,8], index: 0, kind: input, shape index: {}]
  %s1 = inlined_call_operand.vmem [shape: f32[128,256], index: 1, kind: input, shape index: {}]
  %s2 = inlined_call_operand.vmem [shape: f32[1,256], index: 2, kind: input, shape index: {}]
  %s3 = inlined_call_operand.hbm [shape: f32[256,256], index: 3, kind: input, shape index: {}]
  %s4 = inlined_call_operand.vmem [shape: f32[1,256], index: 4, kind: input, shape index: {}]
  %s5 = inlined_call_operand.hbm [shape: f32[256,256], index: 5, kind: input, shape index: {}]
  %s6 = inlined_call_operand.vmem [shape: f32[1,256], index: 6, kind: input, shape index: {}]
  %s7 = inlined_call_operand.hbm [shape: f32[2,8,256], index: 7, kind: output, shape index: {}]
  %s8 = sld [smem:[#allocation0]]
  $region69: #{tpu_custom_call.1} parent=0
    _
  %s10 = ssub.s32 1, %s8
  %s11 = scalar_select 0, %s10, %s8
  $region1: #{tpu_custom_call.1} parent=0
    #allocation2 [shape = 'u8[262144]{0}', space=vmem, size = 0x40000, scoped, tag = 'input window, operand 3, single buffered']
    #allocation3 [shape = 's32[2]{0}', space=sflag, size = 0x8, scoped, tag = 'scoped memory for tpu_custom_call.1']
    #allocation4 [shape = 's32[2]{0}', space=sflag, size = 0x8, scoped, tag = 'scoped memory for tpu_custom_call.1']
    #allocation5 [shape = 'u8[262144]{0}', space=vmem, size = 0x40000, scoped, tag = 'input window, operand 5, single buffered']
    #allocation6 [shape = 's32[1]{0}', space=sflag, size = 0x4, scoped, tag = 'scoped memory for tpu_custom_call.1']
    #allocation7 [shape = 'u8[16384]{0}', space=vmem, size = 0x4000, scoped, tag = 'output window, operand 0']
    %12 = vsyncpa [#allocation3], 0
    %13 = vsyncpa [#allocation6], 0
    %14 = vsyncpa [#allocation4], 0
    %s15 = scalar_lea.sflag [#allocation4], 1
    %16 = vsyncpa %s15, 0
    loop: start=0, step=1, limit=4
    $region2: #{tpu_custom_call.1} parent=1 // loop_pre_header
      _
    $region3: #{tpu_custom_call.1} parent=1 // loop_header
      %s18 = sphi 0, %s22
      %p19 = scmp.ge.s32.totalorder %s18, 4
      %s25 = sphi 0, %s37
      %s26 = sphi 0, %s33
      %s27 = sphi 0, %s25
      %s28 = sphi 0, %s26
      %s29 = sphi 0, %s27
      %s30 = sphi 0, %s28
      %s42 = sphi 0, %s44
      %s45 = sphi 0, %s42
      %s46 = sphi 0, %s45
      %s62 = sphi 0, %s46
      %s66 = sphi 0, %s66
      %s68 = sphi 0, %s66
      %s69 = sphi 0, %s68
      %s83 = sphi 0, %s69
      %s87 = sphi 0, %s87
      %s89 = sphi 0, %s87
      %s90 = sphi 0, %s89
      %s104 = sphi 0, %s90
      %s108 = sphi 0, %s108
      %s110 = sphi 0, %s108
      %s111 = sphi 0, %s110
      %s125 = sphi 0, %s111
      %s129 = sphi 0, %s129
      %s131 = sphi 0, %s129
      %s132 = sphi 0, %s131
      %s146 = sphi 0, %s132
      %s150 = sphi 0, %s150
      %s152 = sphi 0, %s150
      %s153 = sphi 0, %s152
      %s167 = sphi 0, %s153
      %s171 = sphi 0, %s171
      %s173 = sphi 0, %s171
      %s174 = sphi 0, %s173
      %s188 = sphi 0, %s174
      %s196 = sphi 0, %s198
      %s199 = sphi 0, %s196
      %s200 = sphi 0, %s199
      %s216 = sphi 0, %s200
    $region4: #{tpu_custom_call.1} parent=1 // loop_header_branch
      %21 = sbr.rel (%p19) target = $region8
    $region5: #{tpu_custom_call.1} parent=1 // loop_body
      %s23 = ssub.s32 %s18, 1
      %s24 = ssub.s32 %s18, 2
      %s31 = sadd.s32 1, %s26
      %p32 = scmp.ge.s32.totalorder %s31, 1
      %s33 = scalar_select %p32, 0, %s31
      %s34 = sadd.s32 1, %s25
      %s35 = scalar_select %p32, %s34, %s25
      %p36 = scmp.ge.s32.totalorder %s35, 2
      %s37 = scalar_select %p36, 0, %s35
      %s38 = ssub.s32 %s25, %s37
      %s39 = ssub.s32 %s26, %s33
      %s40 = sor.u32 %s38, %s39
      %p41 = scmp.eq.s32.totalorder %s40, 0
      %s43 = sadd.s32 %s42, 1
      %s44 = scalar_select %p41, %s42, %s43
      %p47 = pneg %p41
      %p48 = scmp.eq.s32.totalorder %s18, 1
      %p49 = por %p47, %p48
      %p50 = scmp.ne.s32.totalorder %s42, %s45
      %p51 = scmp.eq.s32.totalorder %s18, 0
      %p52 = por %p50, %p51
      %p53 = scmp.ne.s32.totalorder %s42, %s45
      %p54 = scmp.eq.s32.totalorder %s23, 1
      %p55 = por %p53, %p54
      %p56 = scmp.ne.s32.totalorder %s45, %s46
      %p57 = scmp.eq.s32.totalorder %s23, 0
      %p58 = por %p56, %p57
      %p59 = scmp.ne.s32.totalorder %s45, %s46
      %p60 = scmp.eq.s32.totalorder %s24, 1
      %p61 = por %p59, %p60
      %p63 = scmp.ne.s32.totalorder %s46, %s62
      %p64 = scmp.eq.s32.totalorder %s24, 0
      %p65 = por %p63, %p64
      %s67 = sadd.s32 %s66, 1
      %p70 = scmp.eq.s32.totalorder %s18, 1
      %p71 = scmp.ne.s32.totalorder %s66, %s68
      %p72 = scmp.eq.s32.totalorder %s18, 0
      %p73 = por %p71, %p72
      %p74 = scmp.ne.s32.totalorder %s66, %s68
      %p75 = scmp.eq.s32.totalorder %s23, 1
      %p76 = por %p74, %p75
      %p77 = scmp.ne.s32.totalorder %s68, %s69
      %p78 = scmp.eq.s32.totalorder %s23, 0
      %p79 = por %p77, %p78
      %p80 = scmp.ne.s32.totalorder %s68, %s69
      %p81 = scmp.eq.s32.totalorder %s24, 1
      %p82 = por %p80, %p81
      %p84 = scmp.ne.s32.totalorder %s69, %s83
      %p85 = scmp.eq.s32.totalorder %s24, 0
      %p86 = por %p84, %p85
      %s88 = sadd.s32 %s87, 1
      %p91 = scmp.eq.s32.totalorder %s18, 1
      %p92 = scmp.ne.s32.totalorder %s87, %s89
      %p93 = scmp.eq.s32.totalorder %s18, 0
      %p94 = por %p92, %p93
      %p95 = scmp.ne.s32.totalorder %s87, %s89
      %p96 = scmp.eq.s32.totalorder %s23, 1
      %p97 = por %p95, %p96
      %p98 = scmp.ne.s32.totalorder %s89, %s90
      %p99 = scmp.eq.s32.totalorder %s23, 0
      %p100 = por %p98, %p99
      %p101 = scmp.ne.s32.totalorder %s89, %s90
      %p102 = scmp.eq.s32.totalorder %s24, 1
      %p103 = por %p101, %p102
      %p105 = scmp.ne.s32.totalorder %s90, %s104
      %p106 = scmp.eq.s32.totalorder %s24, 0
      %p107 = por %p105, %p106
      %s109 = sadd.s32 %s108, 1
      %p112 = scmp.eq.s32.totalorder %s18, 1
      %p113 = scmp.ne.s32.totalorder %s108, %s110
      %p114 = scmp.eq.s32.totalorder %s18, 0
      %p115 = por %p113, %p114
      %p116 = scmp.ne.s32.totalorder %s108, %s110
      %p117 = scmp.eq.s32.totalorder %s23, 1
      %p118 = por %p116, %p117
      %p119 = scmp.ne.s32.totalorder %s110, %s111
      %p120 = scmp.eq.s32.totalorder %s23, 0
      %p121 = por %p119, %p120
      %p122 = scmp.ne.s32.totalorder %s110, %s111
      %p123 = scmp.eq.s32.totalorder %s24, 1
      %p124 = por %p122, %p123
      %p126 = scmp.ne.s32.totalorder %s111, %s125
      %p127 = scmp.eq.s32.totalorder %s24, 0
      %p128 = por %p126, %p127
      %s130 = sadd.s32 %s129, 1
      %p133 = scmp.eq.s32.totalorder %s18, 1
      %p134 = scmp.ne.s32.totalorder %s129, %s131
      %p135 = scmp.eq.s32.totalorder %s18, 0
      %p136 = por %p134, %p135
      %p137 = scmp.ne.s32.totalorder %s129, %s131
      %p138 = scmp.eq.s32.totalorder %s23, 1
      %p139 = por %p137, %p138
      %p140 = scmp.ne.s32.totalorder %s131, %s132
      %p141 = scmp.eq.s32.totalorder %s23, 0
      %p142 = por %p140, %p141
      %p143 = scmp.ne.s32.totalorder %s131, %s132
      %p144 = scmp.eq.s32.totalorder %s24, 1
      %p145 = por %p143, %p144
      %p147 = scmp.ne.s32.totalorder %s132, %s146
      %p148 = scmp.eq.s32.totalorder %s24, 0
      %p149 = por %p147, %p148
      %s151 = sadd.s32 %s150, 1
      %p154 = scmp.eq.s32.totalorder %s18, 1
      %p155 = scmp.ne.s32.totalorder %s150, %s152
      %p156 = scmp.eq.s32.totalorder %s18, 0
      %p157 = por %p155, %p156
      %p158 = scmp.ne.s32.totalorder %s150, %s152
      %p159 = scmp.eq.s32.totalorder %s23, 1
      %p160 = por %p158, %p159
      %p161 = scmp.ne.s32.totalorder %s152, %s153
      %p162 = scmp.eq.s32.totalorder %s23, 0
      %p163 = por %p161, %p162
      %p164 = scmp.ne.s32.totalorder %s152, %s153
      %p165 = scmp.eq.s32.totalorder %s24, 1
      %p166 = por %p164, %p165
      %p168 = scmp.ne.s32.totalorder %s153, %s167
      %p169 = scmp.eq.s32.totalorder %s24, 0
      %p170 = por %p168, %p169
      %s172 = sadd.s32 %s171, 1
      %p175 = scmp.eq.s32.totalorder %s18, 1
      %p176 = scmp.ne.s32.totalorder %s171, %s173
      %p177 = scmp.eq.s32.totalorder %s18, 0
      %p178 = por %p176, %p177
      %p179 = scmp.ne.s32.totalorder %s171, %s173
      %p180 = scmp.eq.s32.totalorder %s23, 1
      %p181 = por %p179, %p180
      %p182 = scmp.ne.s32.totalorder %s173, %s174
      %p183 = scmp.eq.s32.totalorder %s23, 0
      %p184 = por %p182, %p183
      %p185 = scmp.ne.s32.totalorder %s173, %s174
      %p186 = scmp.eq.s32.totalorder %s24, 1
      %p187 = por %p185, %p186
      %p189 = scmp.ne.s32.totalorder %s174, %s188
      %p190 = scmp.eq.s32.totalorder %s24, 0
      %p191 = por %p189, %p190
      %s192 = ssub.s32 %s25, %s37
      %s193 = ssub.s32 %s26, %s33
      %s194 = sor.u32 %s192, %s193
      %p195 = scmp.eq.s32.totalorder %s194, 0
      %s197 = sadd.s32 %s196, 1
      %s198 = scalar_select %p195, %s196, %s197
      %p201 = pneg %p195
      %p202 = scmp.eq.s32.totalorder %s18, 1
      %p203 = por %p201, %p202
      %p204 = scmp.ne.s32.totalorder %s196, %s199
      %p205 = scmp.eq.s32.totalorder %s18, 0
      %p206 = por %p204, %p205
      %p207 = scmp.ne.s32.totalorder %s196, %s199
      %p208 = scmp.eq.s32.totalorder %s23, 1
      %p209 = por %p207, %p208
      %p210 = scmp.ne.s32.totalorder %s199, %s200
      %p211 = scmp.eq.s32.totalorder %s23, 0
      %p212 = por %p210, %p211
      %p213 = scmp.ne.s32.totalorder %s199, %s200
      %p214 = scmp.eq.s32.totalorder %s24, 1
      %p215 = por %p213, %p214
      %p217 = scmp.ne.s32.totalorder %s200, %s216
      %p218 = scmp.eq.s32.totalorder %s24, 0
      %p219 = por %p217, %p218
      %p220 = scmp.le.s32.totalorder 1, %s18
      %p221 = scmp.lt.s32.totalorder %s18, 3
      %p222 = pnand %p220, %p221
      %p223 = pneg %p222
      // Predicated region
      $region9: #{tpu_custom_call.1} parent=5 // pred_check
        _
      $region10: #{tpu_custom_call.1} parent=5 // pred_check_branch
        %225 = sbr.rel (%p222) target = $region12
      $region11: #{tpu_custom_call.1} parent=5 // pred_region
        %s226 = ssub.s32 %s18, 1
        // Predicated region
        $region13: #{tpu_custom_call.1} parent=11 // pred_check
          %p227 = pneg %p79
        $region14: #{tpu_custom_call.1} parent=11 // pred_check_branch
          %229 = sbr.rel (%p227) target = $region16
        $region15: #{tpu_custom_call.1} parent=11 // pred_region
          _
        $region16: #{tpu_custom_call.1} parent=11 // pred_fallthru
          _
        // Predicated region
        $region17: #{tpu_custom_call.1} parent=11 // pred_check
          %p230 = pneg %p100
        $region18: #{tpu_custom_call.1} parent=11 // pred_check_branch
          %232 = sbr.rel (%p230) target = $region20
        $region19: #{tpu_custom_call.1} parent=11 // pred_region
          _
        $region20: #{tpu_custom_call.1} parent=11 // pred_fallthru
          _
        // Predicated region
        $region21: #{tpu_custom_call.1} parent=11 // pred_check
          %p233 = pneg %p121
        $region22: #{tpu_custom_call.1} parent=11 // pred_check_branch
          %235 = sbr.rel (%p233) target = $region24
        $region23: #{tpu_custom_call.1} parent=11 // pred_region
          %s237 = ssub.s32 8192, 8192
          %238 = vsyncadd [#allocation3], %s237
          %s239 = sshll.u32 [#allocation2], 4
          %s240 = int_to_ptr.vmem [resolvable:$true] %s239
          %245 = dma.hbm_to_vmem [thread:$0]  %s3, 8192, %s240, [#allocation3], 256, 256, 16
        $region24: #{tpu_custom_call.1} parent=11 // pred_fallthru
          _
        // Predicated region
        $region25: #{tpu_custom_call.1} parent=11 // pred_check
          %p246 = pneg %p142
        $region26: #{tpu_custom_call.1} parent=11 // pred_check_branch
          %248 = sbr.rel (%p246) target = $region28
        $region27: #{tpu_custom_call.1} parent=11 // pred_region
          _
        $region28: #{tpu_custom_call.1} parent=11 // pred_fallthru
          _
        // Predicated region
        $region29: #{tpu_custom_call.1} parent=11 // pred_check
          %p249 = pneg %p163
        $region30: #{tpu_custom_call.1} parent=11 // pred_check_branch
          %251 = sbr.rel (%p249) target = $region32
        $region31: #{tpu_custom_call.1} parent=11 // pred_region
          %s253 = ssub.s32 8192, 8192
          %254 = vsyncadd [#allocation6], %s253
          %s255 = sshll.u32 [#allocation5], 4
          %s256 = int_to_ptr.vmem [resolvable:$true] %s255
          %261 = dma.hbm_to_vmem [thread:$0]  %s5, 8192, %s256, [#allocation6], 256, 256, 16
        $region32: #{tpu_custom_call.1} parent=11 // pred_fallthru
          _
        // Predicated region
        $region33: #{tpu_custom_call.1} parent=11 // pred_check
          %p262 = pneg %p184
        $region34: #{tpu_custom_call.1} parent=11 // pred_check_branch
          %264 = sbr.rel (%p262) target = $region36
        $region35: #{tpu_custom_call.1} parent=11 // pred_region
          _
        $region36: #{tpu_custom_call.1} parent=11 // pred_fallthru
          _
      $region12: #{tpu_custom_call.1} parent=5 // pred_fallthru
        _
      %p265 = scmp.lt.s32.totalorder %s18, 2
      // Predicated region
      $region37: #{tpu_custom_call.1} parent=5 // pred_check
        %p266 = pneg %p265
      $region38: #{tpu_custom_call.1} parent=5 // pred_check_branch
        %268 = sbr.rel (%p266) target = $region40
      $region39: #{tpu_custom_call.1} parent=5 // pred_region
        // Predicated region
        $region41: #{tpu_custom_call.1} parent=39 // pred_check
          %p269 = pneg %p52
        $region42: #{tpu_custom_call.1} parent=39 // pred_check_branch
          %271 = sbr.rel (%p269) target = $region44
        $region43: #{tpu_custom_call.1} parent=39 // pred_region
          %p272 = scmp.lt.s32.totalorder %s25, 1
          %s273 = scalar_select %p272, %s25, 1
          %p274 = scmp.lt.s32.totalorder %s26, 0
          %s275 = scalar_select %p274, %s26, 0
          %s276 = smul.addr %s273, 16
          %s277 = sadd.s32 %s275, %s276
          %s278 = smul.addr %s277, 8
          %s279 = scalar_lea.vmem %s0, %s278
        $region44: #{tpu_custom_call.1} parent=39 // pred_fallthru
          _
      $region40: #{tpu_custom_call.1} parent=5 // pred_fallthru
        _
      %p280 = scmp.le.s32.totalorder 1, %s18
      %p281 = scmp.lt.s32.totalorder %s18, 3
      %p282 = pnand %p280, %p281
      %p283 = pneg %p282
      // Predicated region
      $region45: #{tpu_custom_call.1} parent=5 // pred_check
        _
      $region46: #{tpu_custom_call.1} parent=5 // pred_check_branch
        %285 = sbr.rel (%p282) target = $region48
      $region47: #{tpu_custom_call.1} parent=5 // pred_region
        %s286 = ssub.s32 %s18, 1
        // Predicated region
        $region49: #{tpu_custom_call.1} parent=47 // pred_check
          %p287 = pneg %p121
        $region50: #{tpu_custom_call.1} parent=47 // pred_check_branch
          %289 = sbr.rel (%p287) target = $region52
        $region51: #{tpu_custom_call.1} parent=47 // pred_region
          %290 = dma.done [#allocation3], 8192
        $region52: #{tpu_custom_call.1} parent=47 // pred_fallthru
          _
        // Predicated region
        $region53: #{tpu_custom_call.1} parent=47 // pred_check
          %p291 = pneg %p163
        $region54: #{tpu_custom_call.1} parent=47 // pred_check_branch
          %293 = sbr.rel (%p291) target = $region56
        $region55: #{tpu_custom_call.1} parent=47 // pred_region
          %294 = dma.done [#allocation6], 8192
        $region56: #{tpu_custom_call.1} parent=47 // pred_fallthru
          _
        %p295 = scmp.lt.s32.totalorder %s27, 1
        %s296 = scalar_select %p295, %s27, 1
        %p297 = scmp.lt.s32.totalorder %s28, 0
        %s298 = scalar_select %p297, %s28, 0
        %s299 = smul.addr %s296, 16
        %s300 = sadd.s32 %s298, %s299
        %s301 = smul.addr %s300, 8
        %s302 = scalar_lea.vmem %s0, %s301
        %p303 = pneg %p58
        %p304 = pneg %p55
        %p305 = pneg %p79
        %p306 = pneg %p76
        %p307 = pneg %p100
        %p308 = pneg %p97
        %p309 = pneg %p121
        %p310 = pneg %p118
        %p311 = pneg %p142
        %p312 = pneg %p139
        %p313 = pneg %p163
        %p314 = pneg %p160
        %p315 = pneg %p184
        %p316 = pneg %p181
        %p317 = pneg %p212
        %p318 = pneg %p209
        %s319 = sand.u32 %s199, 1
        %s320 = scalar_lea.sflag [#allocation4], %s319
        %s321 = sand.u32 %s199, 1
        %s322 = smul.addr %s321, 16
        %s323 = scalar_lea.vmem [#allocation7], %s322
        %p324 = scmp.lt.s32.totalorder %s27, 1
        %s325 = scalar_select %p324, %s27, 1
        %p326 = scmp.lt.s32.totalorder %s28, 0
        %s327 = scalar_select %p326, %s28, 0
        %s328 = smul.addr %s325, 16
        %s329 = sadd.s32 %s327, %s328
        %s330 = smul.addr %s329, 8
        %s331 = scalar_lea.vmem %s0, %s330
        %v332 = vld [vmem:[%s331] sm:$0xff]
        %v333 = vld [vmem:[%s331 + $0x8] sm:$0xff]
        %v334 = vld [vmem:[%s331 + $0x10] sm:$0xff]
        %v335 = vld [vmem:[%s331 + $0x18] sm:$0xff]
        %v336 = vld [vmem:[%s331 + $0x20] sm:$0xff]
        %v337 = vld [vmem:[%s331 + $0x28] sm:$0xff]
        %v338 = vld [vmem:[%s331 + $0x30] sm:$0xff]
        %v339 = vld [vmem:[%s331 + $0x38] sm:$0xff]
        %v340 = vld [vmem:[%s331 + $0x40] sm:$0xff]
        %v341 = vld [vmem:[%s331 + $0x48] sm:$0xff]
        %v342 = vld [vmem:[%s331 + $0x50] sm:$0xff]
        %v343 = vld [vmem:[%s331 + $0x58] sm:$0xff]
        %v344 = vld [vmem:[%s331 + $0x60] sm:$0xff]
        %v345 = vld [vmem:[%s331 + $0x68] sm:$0xff]
        %v346 = vld [vmem:[%s331 + $0x70] sm:$0xff]
        %v347 = vld [vmem:[%s331 + $0x78] sm:$0xff]
        %v348 = vld [vmem:[%s1] sm:$0xff]
        %v349 = vld [vmem:[%s1 + $0x8] sm:$0xff]
        %v350 = vld [vmem:[%s1 + $0x10] sm:$0xff]
        %v351 = vld [vmem:[%s1 + $0x18] sm:$0xff]
        %v352 = vld [vmem:[%s1 + $0x20] sm:$0xff]
        %v353 = vld [vmem:[%s1 + $0x28] sm:$0xff]
        %v354 = vld [vmem:[%s1 + $0x30] sm:$0xff]
        %v355 = vld [vmem:[%s1 + $0x38] sm:$0xff]
        %v356 = vld [vmem:[%s1 + $0x40] sm:$0xff]
        %v357 = vld [vmem:[%s1 + $0x48] sm:$0xff]
        %v358 = vld [vmem:[%s1 + $0x50] sm:$0xff]
        %v359 = vld [vmem:[%s1 + $0x58] sm:$0xff]
        %v360 = vld [vmem:[%s1 + $0x60] sm:$0xff]
        %v361 = vld [vmem:[%s1 + $0x68] sm:$0xff]
        %v362 = vld [vmem:[%s1 + $0x70] sm:$0xff]
        %v363 = vld [vmem:[%s1 + $0x78] sm:$0xff]
        %v364 = vld [vmem:[%s1 + $0x80] sm:$0xff]
        %v365 = vld [vmem:[%s1 + $0x88] sm:$0xff]
        %v366 = vld [vmem:[%s1 + $0x90] sm:$0xff]
        %v367 = vld [vmem:[%s1 + $0x98] sm:$0xff]
        %v368 = vld [vmem:[%s1 + $0xa0] sm:$0xff]
        %v369 = vld [vmem:[%s1 + $0xa8] sm:$0xff]
        %v370 = vld [vmem:[%s1 + $0xb0] sm:$0xff]
        %v371 = vld [vmem:[%s1 + $0xb8] sm:$0xff]
        %v372 = vld [vmem:[%s1 + $0xc0] sm:$0xff]
        %v373 = vld [vmem:[%s1 + $0xc8] sm:$0xff]
        %v374 = vld [vmem:[%s1 + $0xd0] sm:$0xff]
        %v375 = vld [vmem:[%s1 + $0xd8] sm:$0xff]
        %v376 = vld [vmem:[%s1 + $0xe0] sm:$0xff]
        %v377 = vld [vmem:[%s1 + $0xe8] sm:$0xff]
        %v378 = vld [vmem:[%s1 + $0xf0] sm:$0xff]
        %v379 = vld [vmem:[%s1 + $0xf8] sm:$0xff]
        %v380 = vld [vmem:[%s2] sm:$0x3]
        %v382 = vlaneseq
        %v383 = vshrl.u32 %v382, 7
        %v384 = vsub.s32 0, %v383
        %v385 = vrot.slane %v380, %v384
        %v386 = vlaneseq
        %v387 = vshrl.u32 %v386, 7
        %v388 = vsub.s32 1, %v387
        %v389 = vrot.slane %v380, %v388
        %392 = vxpose.xlu0.b32.start [1/16] %v332, 128
        %393 = vxpose.xlu0.b32.cont [2/16] %v333, 128
        %394 = vxpose.xlu0.b32.cont [3/16] %v334, 128
        %395 = vxpose.xlu0.b32.cont [4/16] %v335, 128
        %396 = vxpose.xlu0.b32.cont [5/16] %v336, 128
        %397 = vxpose.xlu0.b32.cont [6/16] %v337, 128
        %398 = vxpose.xlu0.b32.cont [7/16] %v338, 128
        %399 = vxpose.xlu0.b32.cont [8/16] %v339, 128
        %400 = vxpose.xlu0.b32.cont [9/16] %v340, 128
        %401 = vxpose.xlu0.b32.cont [10/16] %v341, 128
        %402 = vxpose.xlu0.b32.cont [11/16] %v342, 128
        %403 = vxpose.xlu0.b32.cont [12/16] %v343, 128
        %404 = vxpose.xlu0.b32.cont [13/16] %v344, 128
        %405 = vxpose.xlu0.b32.cont [14/16] %v345, 128
        %406 = vxpose.xlu0.b32.cont [15/16] %v346, 128
        %407 = vxpose.xlu0.b32.end [16/16] %v347, 128
        %v408 = vpop.trf.xlu0
        %v409 = vpop.trf.xlu0
        %v410 = vpop.trf.xlu0
        %v411 = vpop.trf.xlu0
        %v412 = vpop.trf.xlu0
        %v413 = vpop.trf.xlu0
        %v414 = vpop.trf.xlu0
        %v415 = vpop.trf.xlu0
        %v416 = vpop.trf.xlu0
        %v417 = vpop.trf.xlu0
        %v418 = vpop.trf.xlu0
        %v419 = vpop.trf.xlu0
        %v420 = vpop.trf.xlu0
        %v421 = vpop.trf.xlu0
        %v422 = vpop.trf.xlu0
        %v423 = vpop.trf.xlu0
        %424 = vmatprep.subr.mxu0 %v379
        %425 = vmatpush1.msra.mxu0 %v378
        %426 = vmatprep.subr.mxu0 %v377
        %427 = vmatpush1.msra.mxu0 %v376
        %428 = vmatprep.subr.mxu0 %v375
        %429 = vmatpush1.msra.mxu0 %v374
        %430 = vmatprep.subr.mxu0 %v373
        %431 = vmatpush1.msra.mxu0 %v372
        %432 = vmatprep.subr.mxu0 %v371
        %433 = vmatpush1.msra.mxu0 %v370
        %434 = vmatprep.subr.mxu0 %v369
        %435 = vmatpush1.msra.mxu0 %v368
        %436 = vmatprep.subr.mxu0 %v367
        %437 = vmatpush1.msra.mxu0 %v366
        %438 = vmatprep.subr.mxu0 %v365
        %439 = vmatpush1.msra.mxu0 %v364
        %440 = vmatprep.subr.mxu0 %v363
        %441 = vmatpush1.msra.mxu0 %v362
        %442 = vmatprep.subr.mxu0 %v361
        %443 = vmatpush1.msra.mxu0 %v360
        %444 = vmatprep.subr.mxu0 %v359
        %445 = vmatpush1.msra.mxu0 %v358
        %446 = vmatprep.subr.mxu0 %v357
        %447 = vmatpush1.msra.mxu0 %v356
        %448 = vmatprep.subr.mxu0 %v355
        %449 = vmatpush1.msra.mxu0 %v354
        %450 = vmatprep.subr.mxu0 %v353
        %451 = vmatpush1.msra.mxu0 %v352
        %452 = vmatprep.subr.mxu0 %v351
        %453 = vmatpush1.msra.mxu0 %v350
        %454 = vmatprep.subr.mxu0 %v349
        %455 = vmatpush1.msra.mxu0 %v348
        %456 = vmatprep.subr.mxu0 0.0
        %457 = vmatpush2.msra.mxu0 0.0
        %458 = vmatprep.subr.mxu0 0.0
        %459 = vmatpush2.msra.mxu0 0.0
        %460 = vmatprep.subr.mxu0 0.0
        %461 = vmatpush2.msra.mxu0 0.0
        %462 = vmatprep.subr.mxu0 0.0
        %463 = vmatpush2.msra.mxu0 0.0
        %464 = vmatprep.subr.mxu0 0.0
        %465 = vmatpush2.msra.mxu0 0.0
        %466 = vmatprep.subr.mxu0 0.0
        %467 = vmatpush2.msra.mxu0 0.0
        %468 = vmatprep.subr.mxu0 0.0
        %469 = vmatpush2.msra.mxu0 0.0
        %470 = vmatprep.subr.mxu0 0.0
        %471 = vmatpush2.msra.mxu0 0.0
        %472 = vmatprep.subr.mxu0 0.0
        %473 = vmatpush2.msra.mxu0 0.0
        %474 = vmatprep.subr.mxu0 0.0
        %475 = vmatpush2.msra.mxu0 0.0
        %476 = vmatprep.subr.mxu0 0.0
        %477 = vmatpush2.msra.mxu0 0.0
        %478 = vmatprep.subr.mxu0 0.0
        %479 = vmatpush2.msra.mxu0 0.0
        %480 = vmatprep.subr.mxu0 0.0
        %481 = vmatpush2.msra.mxu0 0.0
        %482 = vmatprep.subr.mxu0 0.0
        %483 = vmatpush2.msra.mxu0 0.0
        %484 = vmatprep.subr.mxu0 0.0
        %485 = vmatpush2.msra.mxu0 0.0
        %486 = vmatprep.subr.mxu0 0.0
        %487 = vmatpush2.msra.mxu0 0.0
        %488 = vmatprep.mubr.f32.mxu0 0.0
        %489 = vmatmul.mubr.f32.gmra.mxu0 %v408
        %v490 = vpop.f32.mrf.mxu0
        %v491 = vadd.f32 %v385, %v490
        %v492 = vpop.f32.mrf.mxu0
        %v493 = vadd.f32 %v389, %v492
        %494 = vdwg.mxu0
        %v495 = vmax.f32 %v491, 0.0
        %v496 = vmax.f32 %v493, 0.0
        %v497 = vld [vmem:[#allocation2] sm:$0xff]
        %v498 = vld [vmem:[#allocation2 + $0x8] sm:$0xff]
        %v499 = vld [vmem:[#allocation2 + $0x10] sm:$0xff]
        %v500 = vld [vmem:[#allocation2 + $0x18] sm:$0xff]
        %v501 = vld [vmem:[#allocation2 + $0x20] sm:$0xff]
        %v502 = vld [vmem:[#allocation2 + $0x28] sm:$0xff]
        %v503 = vld [vmem:[#allocation2 + $0x30] sm:$0xff]
        %v504 = vld [vmem:[#allocation2 + $0x38] sm:$0xff]
        %v505 = vld [vmem:[#allocation2 + $0x40] sm:$0xff]
        %v506 = vld [vmem:[#allocation2 + $0x48] sm:$0xff]
        %v507 = vld [vmem:[#allocation2 + $0x50] sm:$0xff]
        %v508 = vld [vmem:[#allocation2 + $0x58] sm:$0xff]
        %v509 = vld [vmem:[#allocation2 + $0x60] sm:$0xff]
        %v510 = vld [vmem:[#allocation2 + $0x68] sm:$0xff]
        %v511 = vld [vmem:[#allocation2 + $0x70] sm:$0xff]
        %v512 = vld [vmem:[#allocation2 + $0x78] sm:$0xff]
        %v513 = vld [vmem:[#allocation2 + $0x80] sm:$0xff]
        %v514 = vld [vmem:[#allocation2 + $0x88] sm:$0xff]
        %v515 = vld [vmem:[#allocation2 + $0x90] sm:$0xff]
        %v516 = vld [vmem:[#allocation2 + $0x98] sm:$0xff]
        %v517 = vld [vmem:[#allocation2 + $0xa0] sm:$0xff]
        %v518 = vld [vmem:[#allocation2 + $0xa8] sm:$0xff]
        %v519 = vld [vmem:[#allocation2 + $0xb0] sm:$0xff]
        %v520 = vld [vmem:[#allocation2 + $0xb8] sm:$0xff]
        %v521 = vld [vmem:[#allocation2 + $0xc0] sm:$0xff]
        %v522 = vld [vmem:[#allocation2 + $0xc8] sm:$0xff]
        %v523 = vld [vmem:[#allocation2 + $0xd0] sm:$0xff]
        %v524 = vld [vmem:[#allocation2 + $0xd8] sm:$0xff]
        %v525 = vld [vmem:[#allocation2 + $0xe0] sm:$0xff]
        %v526 = vld [vmem:[#allocation2 + $0xe8] sm:$0xff]
        %v527 = vld [vmem:[#allocation2 + $0xf0] sm:$0xff]
        %v528 = vld [vmem:[#allocation2 + $0xf8] sm:$0xff]
        %v529 = vld [vmem:[#allocation2 + $0x100] sm:$0xff]
        %v530 = vld [vmem:[#allocation2 + $0x108] sm:$0xff]
        %v531 = vld [vmem:[#allocation2 + $0x110] sm:$0xff]
        %v532 = vld [vmem:[#allocation2 + $0x118] sm:$0xff]
        %v533 = vld [vmem:[#allocation2 + $0x120] sm:$0xff]
        %v534 = vld [vmem:[#allocation2 + $0x128] sm:$0xff]
        %v535 = vld [vmem:[#allocation2 + $0x130] sm:$0xff]
        %v536 = vld [vmem:[#allocation2 + $0x138] sm:$0xff]
        %v537 = vld [vmem:[#allocation2 + $0x140] sm:$0xff]
        %v538 = vld [vmem:[#allocation2 + $0x148] sm:$0xff]
        %v539 = vld [vmem:[#allocation2 + $0x150] sm:$0xff]
        %v540 = vld [vmem:[#allocation2 + $0x158] sm:$0xff]
        %v541 = vld [vmem:[#allocation2 + $0x160] sm:$0xff]
        %v542 = vld [vmem:[#allocation2 + $0x168] sm:$0xff]
        %v543 = vld [vmem:[#allocation2 + $0x170] sm:$0xff]
        %v544 = vld [vmem:[#allocation2 + $0x178] sm:$0xff]
        %v545 = vld [vmem:[#allocation2 + $0x180] sm:$0xff]
        %v546 = vld [vmem:[#allocation2 + $0x188] sm:$0xff]
        %v547 = vld [vmem:[#allocation2 + $0x190] sm:$0xff]
        %v548 = vld [vmem:[#allocation2 + $0x198] sm:$0xff]
        %v549 = vld [vmem:[#allocation2 + $0x1a0] sm:$0xff]
        %v550 = vld [vmem:[#allocation2 + $0x1a8] sm:$0xff]
        %v551 = vld [vmem:[#allocation2 + $0x1b0] sm:$0xff]
        %v552 = vld [vmem:[#allocation2 + $0x1b8] sm:$0xff]
        %v553 = vld [vmem:[#allocation2 + $0x1c0] sm:$0xff]
        %v554 = vld [vmem:[#allocation2 + $0x1c8] sm:$0xff]
        %v555 = vld [vmem:[#allocation2 + $0x1d0] sm:$0xff]
        %v556 = vld [vmem:[#allocation2 + $0x1d8] sm:$0xff]
        %v557 = vld [vmem:[#allocation2 + $0x1e0] sm:$0xff]
        %v558 = vld [vmem:[#allocation2 + $0x1e8] sm:$0xff]
        %v559 = vld [vmem:[#allocation2 + $0x1f0] sm:$0xff]
        %v560 = vld [vmem:[#allocation2 + $0x1f8] sm:$0xff]
        %v561 = vld [vmem:[%s4] sm:$0x3]
        %v563 = vlaneseq
        %v564 = vshrl.u32 %v563, 7
        %v565 = vsub.s32 0, %v564
        %v566 = vrot.slane %v561, %v565
        %v567 = vlaneseq
        %v568 = vshrl.u32 %v567, 7
        %v569 = vsub.s32 1, %v568
        %v570 = vrot.slane %v561, %v569
        %573 = vmatprep.subr.mxu0 %v528
        %574 = vmatpush1.msra.mxu0 %v527
        %575 = vmatprep.subr.mxu0 %v526
        %576 = vmatpush1.msra.mxu0 %v525
        %577 = vmatprep.subr.mxu0 %v524
        %578 = vmatpush1.msra.mxu0 %v523
        %579 = vmatprep.subr.mxu0 %v522
        %580 = vmatpush1.msra.mxu0 %v521
        %581 = vmatprep.subr.mxu0 %v520
        %582 = vmatpush1.msra.mxu0 %v519
        %583 = vmatprep.subr.mxu0 %v518
        %584 = vmatpush1.msra.mxu0 %v517
        %585 = vmatprep.subr.mxu0 %v516
        %586 = vmatpush1.msra.mxu0 %v515
        %587 = vmatprep.subr.mxu0 %v514
        %588 = vmatpush1.msra.mxu0 %v513
        %589 = vmatprep.subr.mxu0 %v512
        %590 = vmatpush1.msra.mxu0 %v511
        %591 = vmatprep.subr.mxu0 %v510
        %592 = vmatpush1.msra.mxu0 %v509
        %593 = vmatprep.subr.mxu0 %v508
        %594 = vmatpush1.msra.mxu0 %v507
        %595 = vmatprep.subr.mxu0 %v506
        %596 = vmatpush1.msra.mxu0 %v505
        %597 = vmatprep.subr.mxu0 %v504
        %598 = vmatpush1.msra.mxu0 %v503
        %599 = vmatprep.subr.mxu0 %v502
        %600 = vmatpush1.msra.mxu0 %v501
        %601 = vmatprep.subr.mxu0 %v500
        %602 = vmatpush1.msra.mxu0 %v499
        %603 = vmatprep.subr.mxu0 %v498
        %604 = vmatpush1.msra.mxu0 %v497
        %605 = vmatprep.subr.mxu0 %v560
        %606 = vmatpush2.msra.mxu0 %v559
        %607 = vmatprep.subr.mxu0 %v558
        %608 = vmatpush2.msra.mxu0 %v557
        %609 = vmatprep.subr.mxu0 %v556
        %610 = vmatpush2.msra.mxu0 %v555
        %611 = vmatprep.subr.mxu0 %v554
        %612 = vmatpush2.msra.mxu0 %v553
        %613 = vmatprep.subr.mxu0 %v552
        %614 = vmatpush2.msra.mxu0 %v551
        %615 = vmatprep.subr.mxu0 %v550
        %616 = vmatpush2.msra.mxu0 %v549
        %617 = vmatprep.subr.mxu0 %v548
        %618 = vmatpush2.msra.mxu0 %v547
        %619 = vmatprep.subr.mxu0 %v546
        %620 = vmatpush2.msra.mxu0 %v545
        %621 = vmatprep.subr.mxu0 %v544
        %622 = vmatpush2.msra.mxu0 %v543
        %623 = vmatprep.subr.mxu0 %v542
        %624 = vmatpush2.msra.mxu0 %v541
        %625 = vmatprep.subr.mxu0 %v540
        %626 = vmatpush2.msra.mxu0 %v539
        %627 = vmatprep.subr.mxu0 %v538
        %628 = vmatpush2.msra.mxu0 %v537
        %629 = vmatprep.subr.mxu0 %v536
        %630 = vmatpush2.msra.mxu0 %v535
        %631 = vmatprep.subr.mxu0 %v534
        %632 = vmatpush2.msra.mxu0 %v533
        %633 = vmatprep.subr.mxu0 %v532
        %634 = vmatpush2.msra.mxu0 %v531
        %635 = vmatprep.subr.mxu0 %v530
        %636 = vmatpush2.msra.mxu0 %v529
        %637 = vmatprep.mubr.f32.mxu0 %v496
        %638 = vmatmul.mubr.f32.gmra.mxu0 %v495
        %v639 = vpop.f32.mrf.mxu0
        %v640 = vadd.f32 %v566, %v639
        %v641 = vpop.f32.mrf.mxu0
        %v642 = vadd.f32 %v570, %v641
        %643 = vdwg.mxu0
        %v644 = vmax.f32 %v640, 0.0
        %v645 = vmax.f32 %v642, 0.0
        %v646 = vld [vmem:[#allocation5] sm:$0xff]
        %v647 = vld [vmem:[#allocation5 + $0x8] sm:$0xff]
        %v648 = vld [vmem:[#allocation5 + $0x10] sm:$0xff]
        %v649 = vld [vmem:[#allocation5 + $0x18] sm:$0xff]
        %v650 = vld [vmem:[#allocation5 + $0x20] sm:$0xff]
        %v651 = vld [vmem:[#allocation5 + $0x28] sm:$0xff]
        %v652 = vld [vmem:[#allocation5 + $0x30] sm:$0xff]
        %v653 = vld [vmem:[#allocation5 + $0x38] sm:$0xff]
        %v654 = vld [vmem:[#allocation5 + $0x40] sm:$0xff]
        %v655 = vld [vmem:[#allocation5 + $0x48] sm:$0xff]
        %v656 = vld [vmem:[#allocation5 + $0x50] sm:$0xff]
        %v657 = vld [vmem:[#allocation5 + $0x58] sm:$0xff]
        %v658 = vld [vmem:[#allocation5 + $0x60] sm:$0xff]
        %v659 = vld [vmem:[#allocation5 + $0x68] sm:$0xff]
        %v660 = vld [vmem:[#allocation5 + $0x70] sm:$0xff]
        %v661 = vld [vmem:[#allocation5 + $0x78] sm:$0xff]
        %v662 = vld [vmem:[#allocation5 + $0x80] sm:$0xff]
        %v663 = vld [vmem:[#allocation5 + $0x88] sm:$0xff]
        %v664 = vld [vmem:[#allocation5 + $0x90] sm:$0xff]
        %v665 = vld [vmem:[#allocation5 + $0x98] sm:$0xff]
        %v666 = vld [vmem:[#allocation5 + $0xa0] sm:$0xff]
        %v667 = vld [vmem:[#allocation5 + $0xa8] sm:$0xff]
        %v668 = vld [vmem:[#allocation5 + $0xb0] sm:$0xff]
        %v669 = vld [vmem:[#allocation5 + $0xb8] sm:$0xff]
        %v670 = vld [vmem:[#allocation5 + $0xc0] sm:$0xff]
        %v671 = vld [vmem:[#allocation5 + $0xc8] sm:$0xff]
        %v672 = vld [vmem:[#allocation5 + $0xd0] sm:$0xff]
        %v673 = vld [vmem:[#allocation5 + $0xd8] sm:$0xff]
        %v674 = vld [vmem:[#allocation5 + $0xe0] sm:$0xff]
        %v675 = vld [vmem:[#allocation5 + $0xe8] sm:$0xff]
        %v676 = vld [vmem:[#allocation5 + $0xf0] sm:$0xff]
        %v677 = vld [vmem:[#allocation5 + $0xf8] sm:$0xff]
        %v678 = vld [vmem:[#allocation5 + $0x100] sm:$0xff]
        %v679 = vld [vmem:[#allocation5 + $0x108] sm:$0xff]
        %v680 = vld [vmem:[#allocation5 + $0x110] sm:$0xff]
        %v681 = vld [vmem:[#allocation5 + $0x118] sm:$0xff]
        %v682 = vld [vmem:[#allocation5 + $0x120] sm:$0xff]
        %v683 = vld [vmem:[#allocation5 + $0x128] sm:$0xff]
        %v684 = vld [vmem:[#allocation5 + $0x130] sm:$0xff]
        %v685 = vld [vmem:[#allocation5 + $0x138] sm:$0xff]
        %v686 = vld [vmem:[#allocation5 + $0x140] sm:$0xff]
        %v687 = vld [vmem:[#allocation5 + $0x148] sm:$0xff]
        %v688 = vld [vmem:[#allocation5 + $0x150] sm:$0xff]
        %v689 = vld [vmem:[#allocation5 + $0x158] sm:$0xff]
        %v690 = vld [vmem:[#allocation5 + $0x160] sm:$0xff]
        %v691 = vld [vmem:[#allocation5 + $0x168] sm:$0xff]
        %v692 = vld [vmem:[#allocation5 + $0x170] sm:$0xff]
        %v693 = vld [vmem:[#allocation5 + $0x178] sm:$0xff]
        %v694 = vld [vmem:[#allocation5 + $0x180] sm:$0xff]
        %v695 = vld [vmem:[#allocation5 + $0x188] sm:$0xff]
        %v696 = vld [vmem:[#allocation5 + $0x190] sm:$0xff]
        %v697 = vld [vmem:[#allocation5 + $0x198] sm:$0xff]
        %v698 = vld [vmem:[#allocation5 + $0x1a0] sm:$0xff]
        %v699 = vld [vmem:[#allocation5 + $0x1a8] sm:$0xff]
        %v700 = vld [vmem:[#allocation5 + $0x1b0] sm:$0xff]
        %v701 = vld [vmem:[#allocation5 + $0x1b8] sm:$0xff]
        %v702 = vld [vmem:[#allocation5 + $0x1c0] sm:$0xff]
        %v703 = vld [vmem:[#allocation5 + $0x1c8] sm:$0xff]
        %v704 = vld [vmem:[#allocation5 + $0x1d0] sm:$0xff]
        %v705 = vld [vmem:[#allocation5 + $0x1d8] sm:$0xff]
        %v706 = vld [vmem:[#allocation5 + $0x1e0] sm:$0xff]
        %v707 = vld [vmem:[#allocation5 + $0x1e8] sm:$0xff]
        %v708 = vld [vmem:[#allocation5 + $0x1f0] sm:$0xff]
        %v709 = vld [vmem:[#allocation5 + $0x1f8] sm:$0xff]
        %v710 = vld [vmem:[%s6] sm:$0x3]
        %v712 = vlaneseq
        %v713 = vshrl.u32 %v712, 7
        %v714 = vsub.s32 0, %v713
        %v715 = vrot.slane %v710, %v714
        %v716 = vlaneseq
        %v717 = vshrl.u32 %v716, 7
        %v718 = vsub.s32 1, %v717
        %v719 = vrot.slane %v710, %v718
        %722 = vmatprep.subr.mxu0 %v677
        %723 = vmatpush1.msra.mxu0 %v676
        %724 = vmatprep.subr.mxu0 %v675
        %725 = vmatpush1.msra.mxu0 %v674
        %726 = vmatprep.subr.mxu0 %v673
        %727 = vmatpush1.msra.mxu0 %v672
        %728 = vmatprep.subr.mxu0 %v671
        %729 = vmatpush1.msra.mxu0 %v670
        %730 = vmatprep.subr.mxu0 %v669
        %731 = vmatpush1.msra.mxu0 %v668
        %732 = vmatprep.subr.mxu0 %v667
        %733 = vmatpush1.msra.mxu0 %v666
        %734 = vmatprep.subr.mxu0 %v665
        %735 = vmatpush1.msra.mxu0 %v664
        %736 = vmatprep.subr.mxu0 %v663
        %737 = vmatpush1.msra.mxu0 %v662
        %738 = vmatprep.subr.mxu0 %v661
        %739 = vmatpush1.msra.mxu0 %v660
        %740 = vmatprep.subr.mxu0 %v659
        %741 = vmatpush1.msra.mxu0 %v658
        %742 = vmatprep.subr.mxu0 %v657
        %743 = vmatpush1.msra.mxu0 %v656
        %744 = vmatprep.subr.mxu0 %v655
        %745 = vmatpush1.msra.mxu0 %v654
        %746 = vmatprep.subr.mxu0 %v653
        %747 = vmatpush1.msra.mxu0 %v652
        %748 = vmatprep.subr.mxu0 %v651
        %749 = vmatpush1.msra.mxu0 %v650
        %750 = vmatprep.subr.mxu0 %v649
        %751 = vmatpush1.msra.mxu0 %v648
        %752 = vmatprep.subr.mxu0 %v647
        %753 = vmatpush1.msra.mxu0 %v646
        %754 = vmatprep.subr.mxu0 %v709
        %755 = vmatpush2.msra.mxu0 %v708
        %756 = vmatprep.subr.mxu0 %v707
        %757 = vmatpush2.msra.mxu0 %v706
        %758 = vmatprep.subr.mxu0 %v705
        %759 = vmatpush2.msra.mxu0 %v704
        %760 = vmatprep.subr.mxu0 %v703
        %761 = vmatpush2.msra.mxu0 %v702
        %762 = vmatprep.subr.mxu0 %v701
        %763 = vmatpush2.msra.mxu0 %v700
        %764 = vmatprep.subr.mxu0 %v699
        %765 = vmatpush2.msra.mxu0 %v698
        %766 = vmatprep.subr.mxu0 %v697
        %767 = vmatpush2.msra.mxu0 %v696
        %768 = vmatprep.subr.mxu0 %v695
        %769 = vmatpush2.msra.mxu0 %v694
        %770 = vmatprep.subr.mxu0 %v693
        %771 = vmatpush2.msra.mxu0 %v692
        %772 = vmatprep.subr.mxu0 %v691
        %773 = vmatpush2.msra.mxu0 %v690
        %774 = vmatprep.subr.mxu0 %v689
        %775 = vmatpush2.msra.mxu0 %v688
        %776 = vmatprep.subr.mxu0 %v687
        %777 = vmatpush2.msra.mxu0 %v686
        %778 = vmatprep.subr.mxu0 %v685
        %779 = vmatpush2.msra.mxu0 %v684
        %780 = vmatprep.subr.mxu0 %v683
        %781 = vmatpush2.msra.mxu0 %v682
        %782 = vmatprep.subr.mxu0 %v681
        %783 = vmatpush2.msra.mxu0 %v680
        %784 = vmatprep.subr.mxu0 %v679
        %785 = vmatpush2.msra.mxu0 %v678
        %786 = vmatprep.mubr.f32.mxu0 %v645
        %787 = vmatmul.mubr.f32.gmra.mxu0 %v644
        %v788 = vpop.f32.mrf.mxu0
        %v789 = vadd.f32 %v715, %v788
        %v790 = vpop.f32.mrf.mxu0
        %v791 = vadd.f32 %v719, %v790
        %792 = vdwg.mxu0
        %793 = vst [vmem:[%s323] sm:$0xff] %v789
        %794 = vst [vmem:[%s323 + $0x8] sm:$0xff] %v791
        %s795 = sand.u32 %s199, 1
        %s796 = scalar_lea.sflag [#allocation4], %s795
        %s797 = sand.u32 %s199, 1
        %s798 = smul.addr %s797, 16
        %s799 = scalar_lea.vmem [#allocation7], %s798
        // Predicated region
        $region57: #{tpu_custom_call.1} parent=47 // pred_check
          %p800 = pneg %p209
        $region58: #{tpu_custom_call.1} parent=47 // pred_check_branch
          %802 = sbr.rel (%p800) target = $region60
        $region59: #{tpu_custom_call.1} parent=47 // pred_region
          %s804 = ssub.s32 256, 256
          %805 = vsyncadd %s796, %s804
          %s806 = smul.addr %s28, 2
          %s807 = smul.addr %s27, 2
          %s808 = sadd.s32 %s806, %s807
          %s809 = smul.addr %s808, 128
          %s810 = scalar_lea.hbm %s7, %s809
          %s812 = sshll.u32 %s799, 4
          %s813 = int_to_ptr.vmem [resolvable:$true] %s812
          %815 = dma.vmem_to_hbm [thread:$0]  %s813, 256, %s810, %s796
        $region60: #{tpu_custom_call.1} parent=47 // pred_fallthru
          _
      $region48: #{tpu_custom_call.1} parent=5 // pred_fallthru
        _
      %p816 = scmp.le.s32.totalorder 2, %s18
      // Predicated region
      $region61: #{tpu_custom_call.1} parent=5 // pred_check
        %p817 = pneg %p816
      $region62: #{tpu_custom_call.1} parent=5 // pred_check_branch
        %819 = sbr.rel (%p817) target = $region64
      $region63: #{tpu_custom_call.1} parent=5 // pred_region
        %s820 = ssub.s32 %s18, 2
        // Predicated region
        $region65: #{tpu_custom_call.1} parent=63 // pred_check
          %p821 = pneg %p215
        $region66: #{tpu_custom_call.1} parent=63 // pred_check_branch
          %823 = sbr.rel (%p821) target = $region68
        $region67: #{tpu_custom_call.1} parent=63 // pred_region
          %s824 = sand.u32 %s200, 1
          %s825 = scalar_lea.sflag [#allocation4], %s824
          %s826 = sand.u32 %s200, 1
          %s827 = smul.addr %s826, 16
          %s828 = scalar_lea.vmem [#allocation7], %s827
          %829 = dma.done %s825, 256
        $region68: #{tpu_custom_call.1} parent=63 // pred_fallthru
          _
      $region64: #{tpu_custom_call.1} parent=5 // pred_fallthru
        _
    $region6: #{tpu_custom_call.1} parent=1 // loop_footer
      %s22 = sadd.s32 1, %s18
    $region7: #{tpu_custom_call.1} parent=1 // loop_footer_branch
      %17 = sbr.rel target = $region3
    $region8: #{tpu_custom_call.1} parent=1 // loop_exit
      _
    %830 = vsyncpa [#allocation3], 1
    %s831 = scalar_lea.sflag [#allocation3], 1
    %832 = vsyncpa %s831, 1
    %833 = vsyncpa [#allocation6], 1
    %834 = vsyncpa [#allocation4], 1
    %s835 = scalar_lea.sflag [#allocation4], 1
    %836 = vsyncpa %s835, 1

// kernel: tpu_custom_call.1
$region0: #{tpu_custom_call.1}
  #allocation0 [shape = 'u32[]', space=smem, size = 0x4, offset = 0x4, fixed_abs, tag = 'smem constant byte address 0x4 - core index']
  #allocation1 [shape = 'u32[144,128]{1,0:T(1,128)}', space=vmem, size = 0x12000, scoped, tag = 'internal scratch']
  %s0 = inlined_call_operand.vmem [shape: f32[2,128,8], index: 0, kind: input, shape index: {}]
  %s1 = inlined_call_operand.vmem [shape: f32[128,256], index: 1, kind: input, shape index: {}]
  %s2 = inlined_call_operand.vmem [shape: f32[1,256], index: 2, kind: input, shape index: {}]
  %s3 = inlined_call_operand.hbm [shape: f32[256,256], index: 3, kind: input, shape index: {}]
  %s4 = inlined_call_operand.vmem [shape: f32[1,256], index: 4, kind: input, shape index: {}]
  %s5 = inlined_call_operand.hbm [shape: f32[256,256], index: 5, kind: input, shape index: {}]
  %s6 = inlined_call_operand.vmem [shape: f32[1,256], index: 6, kind: input, shape index: {}]
  %s7 = inlined_call_operand.hbm [shape: f32[2,8,256], index: 7, kind: output, shape index: {}]
  %s8 = sld [smem:[#allocation0]]
  $region69: #{tpu_custom_call.1} parent=0
    _
  %s10 = ssub.s32 1, %s8
  %s11 = scalar_select 0, %s10, %s8
  $region1: #{tpu_custom_call.1} parent=0
    #allocation2 [shape = 'u8[262144]{0}', space=vmem, size = 0x40000, scoped, tag = 'input window, operand 3, single buffered']
    #allocation3 [shape = 's32[2]{0}', space=sflag, size = 0x8, scoped, tag = 'scoped memory for tpu_custom_call.1']
    #allocation4 [shape = 's32[2]{0}', space=sflag, size = 0x8, scoped, tag = 'scoped memory for tpu_custom_call.1']
    #allocation5 [shape = 'u8[262144]{0}', space=vmem, size = 0x40000, scoped, tag = 'input window, operand 5, single buffered']
    #allocation6 [shape = 's32[1]{0}', space=sflag, size = 0x4, scoped, tag = 'scoped memory for tpu_custom_call.1']
    #allocation7 [shape = 'u8[16384]{0}', space=vmem, size = 0x4000, scoped, tag = 'output window, operand 0']
    %12 = vsyncpa [#allocation3], 0
    %13 = vsyncpa [#allocation6], 0
    %14 = vsyncpa [#allocation4], 0
    %s15 = scalar_lea.sflag [#allocation4], 1
    %16 = vsyncpa %s15, 0
    loop: start=0, step=1, limit=4
    $region2: #{tpu_custom_call.1} parent=1 // loop_pre_header
      _
    $region3: #{tpu_custom_call.1} parent=1 // loop_header
      %s18 = sphi 0, %s22
      %p19 = scmp.ge.s32.totalorder %s18, 4
      %s25 = sphi 0, %s37
      %s26 = sphi 0, %s33
      %s27 = sphi 0, %s25
      %s28 = sphi 0, %s26
      %s29 = sphi 0, %s27
      %s30 = sphi 0, %s28
      %s42 = sphi 0, %s44
      %s45 = sphi 0, %s42
      %s46 = sphi 0, %s45
      %s62 = sphi 0, %s46
      %s66 = sphi 0, %s66
      %s68 = sphi 0, %s66
      %s69 = sphi 0, %s68
      %s83 = sphi 0, %s69
      %s87 = sphi 0, %s87
      %s89 = sphi 0, %s87
      %s90 = sphi 0, %s89
      %s104 = sphi 0, %s90
      %s108 = sphi 0, %s108
      %s110 = sphi 0, %s108
      %s111 = sphi 0, %s110
      %s125 = sphi 0, %s111
      %s129 = sphi 0, %s129
      %s131 = sphi 0, %s129
      %s132 = sphi 0, %s131
      %s146 = sphi 0, %s132
      %s150 = sphi 0, %s150
      %s152 = sphi 0, %s150
      %s153 = sphi 0, %s152
      %s167 = sphi 0, %s153
      %s171 = sphi 0, %s171
      %s173 = sphi 0, %s171
      %s174 = sphi 0, %s173
      %s188 = sphi 0, %s174
      %s196 = sphi 0, %s198
      %s199 = sphi 0, %s196
      %s200 = sphi 0, %s199
      %s216 = sphi 0, %s200
    $region4: #{tpu_custom_call.1} parent=1 // loop_header_branch
      %21 = sbr.rel (%p19) target = $region8
    $region5: #{tpu_custom_call.1} parent=1 // loop_body
      %s23 = ssub.s32 %s18, 1
      %s24 = ssub.s32 %s18, 2
      %s31 = sadd.s32 1, %s26
      %p32 = scmp.ge.s32.totalorder %s31, 1
      %s33 = scalar_select %p32, 0, %s31
      %s34 = sadd.s32 1, %s25
      %s35 = scalar_select %p32, %s34, %s25
      %p36 = scmp.ge.s32.totalorder %s35, 2
      %s37 = scalar_select %p36, 0, %s35
      %s38 = ssub.s32 %s25, %s37
      %s39 = ssub.s32 %s26, %s33
      %s40 = sor.u32 %s38, %s39
      %p41 = scmp.eq.s32.totalorder %s40, 0
      %s43 = sadd.s32 %s42, 1
      %s44 = scalar_select %p41, %s42, %s43
      %p47 = pneg %p41
      %p48 = scmp.eq.s32.totalorder %s18, 1
      %p49 = por %p47, %p48
      %p50 = scmp.ne.s32.totalorder %s42, %s45
      %p51 = scmp.eq.s32.totalorder %s18, 0
      %p52 = por %p50, %p51
      %p53 = scmp.ne.s32.totalorder %s42, %s45
      %p54 = scmp.eq.s32.totalorder %s23, 1
      %p55 = por %p53, %p54
      %p56 = scmp.ne.s32.totalorder %s45, %s46
      %p57 = scmp.eq.s32.totalorder %s23, 0
      %p58 = por %p56, %p57
      %p59 = scmp.ne.s32.totalorder %s45, %s46
      %p60 = scmp.eq.s32.totalorder %s24, 1
      %p61 = por %p59, %p60
      %p63 = scmp.ne.s32.totalorder %s46, %s62
      %p64 = scmp.eq.s32.totalorder %s24, 0
      %p65 = por %p63, %p64
      %s67 = sadd.s32 %s66, 1
      %p70 = scmp.eq.s32.totalorder %s18, 1
      %p71 = scmp.ne.s32.totalorder %s66, %s68
      %p72 = scmp.eq.s32.totalorder %s18, 0
      %p73 = por %p71, %p72
      %p74 = scmp.ne.s32.totalorder %s66, %s68
      %p75 = scmp.eq.s32.totalorder %s23, 1
      %p76 = por %p74, %p75
      %p77 = scmp.ne.s32.totalorder %s68, %s69
      %p78 = scmp.eq.s32.totalorder %s23, 0
      %p79 = por %p77, %p78
      %p80 = scmp.ne.s32.totalorder %s68, %s69
      %p81 = scmp.eq.s32.totalorder %s24, 1
      %p82 = por %p80, %p81
      %p84 = scmp.ne.s32.totalorder %s69, %s83
      %p85 = scmp.eq.s32.totalorder %s24, 0
      %p86 = por %p84, %p85
      %s88 = sadd.s32 %s87, 1
      %p91 = scmp.eq.s32.totalorder %s18, 1
      %p92 = scmp.ne.s32.totalorder %s87, %s89
      %p93 = scmp.eq.s32.totalorder %s18, 0
      %p94 = por %p92, %p93
      %p95 = scmp.ne.s32.totalorder %s87, %s89
      %p96 = scmp.eq.s32.totalorder %s23, 1
      %p97 = por %p95, %p96
      %p98 = scmp.ne.s32.totalorder %s89, %s90
      %p99 = scmp.eq.s32.totalorder %s23, 0
      %p100 = por %p98, %p99
      %p101 = scmp.ne.s32.totalorder %s89, %s90
      %p102 = scmp.eq.s32.totalorder %s24, 1
      %p103 = por %p101, %p102
      %p105 = scmp.ne.s32.totalorder %s90, %s104
      %p106 = scmp.eq.s32.totalorder %s24, 0
      %p107 = por %p105, %p106
      %s109 = sadd.s32 %s108, 1
      %p112 = scmp.eq.s32.totalorder %s18, 1
      %p113 = scmp.ne.s32.totalorder %s108, %s110
      %p114 = scmp.eq.s32.totalorder %s18, 0
      %p115 = por %p113, %p114
      %p116 = scmp.ne.s32.totalorder %s108, %s110
      %p117 = scmp.eq.s32.totalorder %s23, 1
      %p118 = por %p116, %p117
      %p119 = scmp.ne.s32.totalorder %s110, %s111
      %p120 = scmp.eq.s32.totalorder %s23, 0
      %p121 = por %p119, %p120
      %p122 = scmp.ne.s32.totalorder %s110, %s111
      %p123 = scmp.eq.s32.totalorder %s24, 1
      %p124 = por %p122, %p123
      %p126 = scmp.ne.s32.totalorder %s111, %s125
      %p127 = scmp.eq.s32.totalorder %s24, 0
      %p128 = por %p126, %p127
      %s130 = sadd.s32 %s129, 1
      %p133 = scmp.eq.s32.totalorder %s18, 1
      %p134 = scmp.ne.s32.totalorder %s129, %s131
      %p135 = scmp.eq.s32.totalorder %s18, 0
      %p136 = por %p134, %p135
      %p137 = scmp.ne.s32.totalorder %s129, %s131
      %p138 = scmp.eq.s32.totalorder %s23, 1
      %p139 = por %p137, %p138
      %p140 = scmp.ne.s32.totalorder %s131, %s132
      %p141 = scmp.eq.s32.totalorder %s23, 0
      %p142 = por %p140, %p141
      %p143 = scmp.ne.s32.totalorder %s131, %s132
      %p144 = scmp.eq.s32.totalorder %s24, 1
      %p145 = por %p143, %p144
      %p147 = scmp.ne.s32.totalorder %s132, %s146
      %p148 = scmp.eq.s32.totalorder %s24, 0
      %p149 = por %p147, %p148
      %s151 = sadd.s32 %s150, 1
      %p154 = scmp.eq.s32.totalorder %s18, 1
      %p155 = scmp.ne.s32.totalorder %s150, %s152
      %p156 = scmp.eq.s32.totalorder %s18, 0
      %p157 = por %p155, %p156
      %p158 = scmp.ne.s32.totalorder %s150, %s152
      %p159 = scmp.eq.s32.totalorder %s23, 1
      %p160 = por %p158, %p159
      %p161 = scmp.ne.s32.totalorder %s152, %s153
      %p162 = scmp.eq.s32.totalorder %s23, 0
      %p163 = por %p161, %p162
      %p164 = scmp.ne.s32.totalorder %s152, %s153
      %p165 = scmp.eq.s32.totalorder %s24, 1
      %p166 = por %p164, %p165
      %p168 = scmp.ne.s32.totalorder %s153, %s167
      %p169 = scmp.eq.s32.totalorder %s24, 0
      %p170 = por %p168, %p169
      %s172 = sadd.s32 %s171, 1
      %p175 = scmp.eq.s32.totalorder %s18, 1
      %p176 = scmp.ne.s32.totalorder %s171, %s173
      %p177 = scmp.eq.s32.totalorder %s18, 0
      %p178 = por %p176, %p177
      %p179 = scmp.ne.s32.totalorder %s171, %s173
      %p180 = scmp.eq.s32.totalorder %s23, 1
      %p181 = por %p179, %p180
      %p182 = scmp.ne.s32.totalorder %s173, %s174
      %p183 = scmp.eq.s32.totalorder %s23, 0
      %p184 = por %p182, %p183
      %p185 = scmp.ne.s32.totalorder %s173, %s174
      %p186 = scmp.eq.s32.totalorder %s24, 1
      %p187 = por %p185, %p186
      %p189 = scmp.ne.s32.totalorder %s174, %s188
      %p190 = scmp.eq.s32.totalorder %s24, 0
      %p191 = por %p189, %p190
      %s192 = ssub.s32 %s25, %s37
      %s193 = ssub.s32 %s26, %s33
      %s194 = sor.u32 %s192, %s193
      %p195 = scmp.eq.s32.totalorder %s194, 0
      %s197 = sadd.s32 %s196, 1
      %s198 = scalar_select %p195, %s196, %s197
      %p201 = pneg %p195
      %p202 = scmp.eq.s32.totalorder %s18, 1
      %p203 = por %p201, %p202
      %p204 = scmp.ne.s32.totalorder %s196, %s199
      %p205 = scmp.eq.s32.totalorder %s18, 0
      %p206 = por %p204, %p205
      %p207 = scmp.ne.s32.totalorder %s196, %s199
      %p208 = scmp.eq.s32.totalorder %s23, 1
      %p209 = por %p207, %p208
      %p210 = scmp.ne.s32.totalorder %s199, %s200
      %p211 = scmp.eq.s32.totalorder %s23, 0
      %p212 = por %p210, %p211
      %p213 = scmp.ne.s32.totalorder %s199, %s200
      %p214 = scmp.eq.s32.totalorder %s24, 1
      %p215 = por %p213, %p214
      %p217 = scmp.ne.s32.totalorder %s200, %s216
      %p218 = scmp.eq.s32.totalorder %s24, 0
      %p219 = por %p217, %p218
      %p220 = scmp.le.s32.totalorder 1, %s18
      %p221 = scmp.lt.s32.totalorder %s18, 3
      %p222 = pnand %p220, %p221
      %p223 = pneg %p222
      // Predicated region
      $region9: #{tpu_custom_call.1} parent=5 // pred_check
        _
      $region10: #{tpu_custom_call.1} parent=5 // pred_check_branch
        %225 = sbr.rel (%p222) target = $region12
      $region11: #{tpu_custom_call.1} parent=5 // pred_region
        %s226 = ssub.s32 %s18, 1
        // Predicated region
        $region13: #{tpu_custom_call.1} parent=11 // pred_check
          %p227 = pneg %p79
        $region14: #{tpu_custom_call.1} parent=11 // pred_check_branch
          %229 = sbr.rel (%p227) target = $region16
        $region15: #{tpu_custom_call.1} parent=11 // pred_region
          _
        $region16: #{tpu_custom_call.1} parent=11 // pred_fallthru
          _
        // Predicated region
        $region17: #{tpu_custom_call.1} parent=11 // pred_check
          %p230 = pneg %p100
        $region18: #{tpu_custom_call.1} parent=11 // pred_check_branch
          %232 = sbr.rel (%p230) target = $region20
        $region19: #{tpu_custom_call.1} parent=11 // pred_region
          _
        $region20: #{tpu_custom_call.1} parent=11 // pred_fallthru
          _
        // Predicated region
        $region21: #{tpu_custom_call.1} parent=11 // pred_check
          %p233 = pneg %p121
        $region22: #{tpu_custom_call.1} parent=11 // pred_check_branch
          %235 = sbr.rel (%p233) target = $region24
        $region23: #{tpu_custom_call.1} parent=11 // pred_region
          %s237 = ssub.s32 8192, 8192
          %238 = vsyncadd [#allocation3], %s237
          %s239 = sshll.u32 [#allocation2], 4
          %s240 = int_to_ptr.vmem [resolvable:$true] %s239
          %245 = dma.hbm_to_vmem [thread:$0]  %s3, 8192, %s240, [#allocation3], 256, 256, 16
        $region24: #{tpu_custom_call.1} parent=11 // pred_fallthru
          _
        // Predicated region
        $region25: #{tpu_custom_call.1} parent=11 // pred_check
          %p246 = pneg %p142
        $region26: #{tpu_custom_call.1} parent=11 // pred_check_branch
          %248 = sbr.rel (%p246) target = $region28
        $region27: #{tpu_custom_call.1} parent=11 // pred_region
          _
        $region28: #{tpu_custom_call.1} parent=11 // pred_fallthru
          _
        // Predicated region
        $region29: #{tpu_custom_call.1} parent=11 // pred_check
          %p249 = pneg %p163
        $region30: #{tpu_custom_call.1} parent=11 // pred_check_branch
          %251 = sbr.rel (%p249) target = $region32
        $region31: #{tpu_custom_call.1} parent=11 // pred_region
          %s253 = ssub.s32 8192, 8192
          %254 = vsyncadd [#allocation6], %s253
          %s255 = sshll.u32 [#allocation5], 4
          %s256 = int_to_ptr.vmem [resolvable:$true] %s255
          %261 = dma.hbm_to_vmem [thread:$0]  %s5, 8192, %s256, [#allocation6], 256, 256, 16
        $region32: #{tpu_custom_call.1} parent=11 // pred_fallthru
          _
        // Predicated region
        $region33: #{tpu_custom_call.1} parent=11 // pred_check
          %p262 = pneg %p184
        $region34: #{tpu_custom_call.1} parent=11 // pred_check_branch
          %264 = sbr.rel (%p262) target = $region36
        $region35: #{tpu_custom_call.1} parent=11 // pred_region
          _
        $region36: #{tpu_custom_call.1} parent=11 // pred_fallthru
          _
      $region12: #{tpu_custom_call.1} parent=5 // pred_fallthru
        _
      %p265 = scmp.lt.s32.totalorder %s18, 2
      // Predicated region
      $region37: #{tpu_custom_call.1} parent=5 // pred_check
        %p266 = pneg %p265
      $region38: #{tpu_custom_call.1} parent=5 // pred_check_branch
        %268 = sbr.rel (%p266) target = $region40
      $region39: #{tpu_custom_call.1} parent=5 // pred_region
        // Predicated region
        $region41: #{tpu_custom_call.1} parent=39 // pred_check
          %p269 = pneg %p52
        $region42: #{tpu_custom_call.1} parent=39 // pred_check_branch
          %271 = sbr.rel (%p269) target = $region44
        $region43: #{tpu_custom_call.1} parent=39 // pred_region
          %p272 = scmp.lt.s32.totalorder %s25, 1
          %s273 = scalar_select %p272, %s25, 1
          %p274 = scmp.lt.s32.totalorder %s26, 0
          %s275 = scalar_select %p274, %s26, 0
          %s276 = smul.addr %s273, 16
          %s277 = sadd.s32 %s275, %s276
          %s278 = smul.addr %s277, 8
          %s279 = scalar_lea.vmem %s0, %s278
        $region44: #{tpu_custom_call.1} parent=39 // pred_fallthru
          _
      $region40: #{tpu_custom_call.1} parent=5 // pred_fallthru
        _
      %p280 = scmp.le.s32.totalorder 1, %s18
      %p281 = scmp.lt.s32.totalorder %s18, 3
      %p282 = pnand %p280, %p281
      %p283 = pneg %p282
      // Predicated region
      $region45: #{tpu_custom_call.1} parent=5 // pred_check
        _
      $region46: #{tpu_custom_call.1} parent=5 // pred_check_branch
        %285 = sbr.rel (%p282) target = $region48
      $region47: #{tpu_custom_call.1} parent=5 // pred_region
        %s286 = ssub.s32 %s18, 1
        // Predicated region
        $region49: #{tpu_custom_call.1} parent=47 // pred_check
          %p287 = pneg %p121
        $region50: #{tpu_custom_call.1} parent=47 // pred_check_branch
          %289 = sbr.rel (%p287) target = $region52
        $region51: #{tpu_custom_call.1} parent=47 // pred_region
          %290 = dma.done [#allocation3], 8192
        $region52: #{tpu_custom_call.1} parent=47 // pred_fallthru
          _
        // Predicated region
        $region53: #{tpu_custom_call.1} parent=47 // pred_check
          %p291 = pneg %p163
        $region54: #{tpu_custom_call.1} parent=47 // pred_check_branch
          %293 = sbr.rel (%p291) target = $region56
        $region55: #{tpu_custom_call.1} parent=47 // pred_region
          %294 = dma.done [#allocation6], 8192
        $region56: #{tpu_custom_call.1} parent=47 // pred_fallthru
          _
        %p295 = scmp.lt.s32.totalorder %s27, 1
        %s296 = scalar_select %p295, %s27, 1
        %p297 = scmp.lt.s32.totalorder %s28, 0
        %s298 = scalar_select %p297, %s28, 0
        %s299 = smul.addr %s296, 16
        %s300 = sadd.s32 %s298, %s299
        %s301 = smul.addr %s300, 8
        %s302 = scalar_lea.vmem %s0, %s301
        %p303 = pneg %p58
        %p304 = pneg %p55
        %p305 = pneg %p79
        %p306 = pneg %p76
        %p307 = pneg %p100
        %p308 = pneg %p97
        %p309 = pneg %p121
        %p310 = pneg %p118
        %p311 = pneg %p142
        %p312 = pneg %p139
        %p313 = pneg %p163
        %p314 = pneg %p160
        %p315 = pneg %p184
        %p316 = pneg %p181
        %p317 = pneg %p212
        %p318 = pneg %p209
        %s319 = sand.u32 %s199, 1
        %s320 = scalar_lea.sflag [#allocation4], %s319
        %s321 = sand.u32 %s199, 1
        %s322 = smul.addr %s321, 16
        %s323 = scalar_lea.vmem [#allocation7], %s322
        %p324 = scmp.lt.s32.totalorder %s27, 1
        %s325 = scalar_select %p324, %s27, 1
        %p326 = scmp.lt.s32.totalorder %s28, 0
        %s327 = scalar_select %p326, %s28, 0
        %s328 = smul.addr %s325, 16
        %s329 = sadd.s32 %s327, %s328
        %s330 = smul.addr %s329, 8
        %s331 = scalar_lea.vmem %s0, %s330
        %v332 = vld [vmem:[%s331] sm:$0xff]
        %v333 = vld [vmem:[%s331 + $0x8] sm:$0xff]
        %v334 = vld [vmem:[%s331 + $0x10] sm:$0xff]
        %v335 = vld [vmem:[%s331 + $0x18] sm:$0xff]
        %v336 = vld [vmem:[%s331 + $0x20] sm:$0xff]
        %v337 = vld [vmem:[%s331 + $0x28] sm:$0xff]
        %v338 = vld [vmem:[%s331 + $0x30] sm:$0xff]
        %v339 = vld [vmem:[%s331 + $0x38] sm:$0xff]
        %v340 = vld [vmem:[%s331 + $0x40] sm:$0xff]
        %v341 = vld [vmem:[%s331 + $0x48] sm:$0xff]
        %v342 = vld [vmem:[%s331 + $0x50] sm:$0xff]
        %v343 = vld [vmem:[%s331 + $0x58] sm:$0xff]
        %v344 = vld [vmem:[%s331 + $0x60] sm:$0xff]
        %v345 = vld [vmem:[%s331 + $0x68] sm:$0xff]
        %v346 = vld [vmem:[%s331 + $0x70] sm:$0xff]
        %v347 = vld [vmem:[%s331 + $0x78] sm:$0xff]
        %v348 = vld [vmem:[%s1] sm:$0xff]
        %v349 = vld [vmem:[%s1 + $0x8] sm:$0xff]
        %v350 = vld [vmem:[%s1 + $0x10] sm:$0xff]
        %v351 = vld [vmem:[%s1 + $0x18] sm:$0xff]
        %v352 = vld [vmem:[%s1 + $0x20] sm:$0xff]
        %v353 = vld [vmem:[%s1 + $0x28] sm:$0xff]
        %v354 = vld [vmem:[%s1 + $0x30] sm:$0xff]
        %v355 = vld [vmem:[%s1 + $0x38] sm:$0xff]
        %v356 = vld [vmem:[%s1 + $0x40] sm:$0xff]
        %v357 = vld [vmem:[%s1 + $0x48] sm:$0xff]
        %v358 = vld [vmem:[%s1 + $0x50] sm:$0xff]
        %v359 = vld [vmem:[%s1 + $0x58] sm:$0xff]
        %v360 = vld [vmem:[%s1 + $0x60] sm:$0xff]
        %v361 = vld [vmem:[%s1 + $0x68] sm:$0xff]
        %v362 = vld [vmem:[%s1 + $0x70] sm:$0xff]
        %v363 = vld [vmem:[%s1 + $0x78] sm:$0xff]
        %v364 = vld [vmem:[%s1 + $0x80] sm:$0xff]
        %v365 = vld [vmem:[%s1 + $0x88] sm:$0xff]
        %v366 = vld [vmem:[%s1 + $0x90] sm:$0xff]
        %v367 = vld [vmem:[%s1 + $0x98] sm:$0xff]
        %v368 = vld [vmem:[%s1 + $0xa0] sm:$0xff]
        %v369 = vld [vmem:[%s1 + $0xa8] sm:$0xff]
        %v370 = vld [vmem:[%s1 + $0xb0] sm:$0xff]
        %v371 = vld [vmem:[%s1 + $0xb8] sm:$0xff]
        %v372 = vld [vmem:[%s1 + $0xc0] sm:$0xff]
        %v373 = vld [vmem:[%s1 + $0xc8] sm:$0xff]
        %v374 = vld [vmem:[%s1 + $0xd0] sm:$0xff]
        %v375 = vld [vmem:[%s1 + $0xd8] sm:$0xff]
        %v376 = vld [vmem:[%s1 + $0xe0] sm:$0xff]
        %v377 = vld [vmem:[%s1 + $0xe8] sm:$0xff]
        %v378 = vld [vmem:[%s1 + $0xf0] sm:$0xff]
        %v379 = vld [vmem:[%s1 + $0xf8] sm:$0xff]
        %v380 = vld [vmem:[%s2] sm:$0x3]
        %v382 = vlaneseq
        %v383 = vshrl.u32 %v382, 7
        %v384 = vsub.s32 0, %v383
        %v385 = vrot.slane %v380, %v384
        %v386 = vlaneseq
        %v387 = vshrl.u32 %v386, 7
        %v388 = vsub.s32 1, %v387
        %v389 = vrot.slane %v380, %v388
        %392 = vxpose.xlu0.b32.start [1/16] %v332, 128
        %393 = vxpose.xlu0.b32.cont [2/16] %v333, 128
        %394 = vxpose.xlu0.b32.cont [3/16] %v334, 128
        %395 = vxpose.xlu0.b32.cont [4/16] %v335, 128
        %396 = vxpose.xlu0.b32.cont [5/16] %v336, 128
        %397 = vxpose.xlu0.b32.cont [6/16] %v337, 128
        %398 = vxpose.xlu0.b32.cont [7/16] %v338, 128
        %399 = vxpose.xlu0.b32.cont [8/16] %v339, 128
        %400 = vxpose.xlu0.b32.cont [9/16] %v340, 128
        %401 = vxpose.xlu0.b32.cont [10/16] %v341, 128
        %402 = vxpose.xlu0.b32.cont [11/16] %v342, 128
        %403 = vxpose.xlu0.b32.cont [12/16] %v343, 128
        %404 = vxpose.xlu0.b32.cont [13/16] %v344, 128
        %405 = vxpose.xlu0.b32.cont [14/16] %v345, 128
        %406 = vxpose.xlu0.b32.cont [15/16] %v346, 128
        %407 = vxpose.xlu0.b32.end [16/16] %v347, 128
        %v408 = vpop.trf.xlu0
        %v409 = vpop.trf.xlu0
        %v410 = vpop.trf.xlu0
        %v411 = vpop.trf.xlu0
        %v412 = vpop.trf.xlu0
        %v413 = vpop.trf.xlu0
        %v414 = vpop.trf.xlu0
        %v415 = vpop.trf.xlu0
        %v416 = vpop.trf.xlu0
        %v417 = vpop.trf.xlu0
        %v418 = vpop.trf.xlu0
        %v419 = vpop.trf.xlu0
        %v420 = vpop.trf.xlu0
        %v421 = vpop.trf.xlu0
        %v422 = vpop.trf.xlu0
        %v423 = vpop.trf.xlu0
        %424 = vmatprep.subr.mxu0 %v379
        %425 = vmatpush1.msra.mxu0 %v378
        %426 = vmatprep.subr.mxu0 %v377
        %427 = vmatpush1.msra.mxu0 %v376
        %428 = vmatprep.subr.mxu0 %v375
        %429 = vmatpush1.msra.mxu0 %v374
        %430 = vmatprep.subr.mxu0 %v373
        %431 = vmatpush1.msra.mxu0 %v372
        %432 = vmatprep.subr.mxu0 %v371
        %433 = vmatpush1.msra.mxu0 %v370
        %434 = vmatprep.subr.mxu0 %v369
        %435 = vmatpush1.msra.mxu0 %v368
        %436 = vmatprep.subr.mxu0 %v367
        %437 = vmatpush1.msra.mxu0 %v366
        %438 = vmatprep.subr.mxu0 %v365
        %439 = vmatpush1.msra.mxu0 %v364
        %440 = vmatprep.subr.mxu0 %v363
        %441 = vmatpush1.msra.mxu0 %v362
        %442 = vmatprep.subr.mxu0 %v361
        %443 = vmatpush1.msra.mxu0 %v360
        %444 = vmatprep.subr.mxu0 %v359
        %445 = vmatpush1.msra.mxu0 %v358
        %446 = vmatprep.subr.mxu0 %v357
        %447 = vmatpush1.msra.mxu0 %v356
        %448 = vmatprep.subr.mxu0 %v355
        %449 = vmatpush1.msra.mxu0 %v354
        %450 = vmatprep.subr.mxu0 %v353
        %451 = vmatpush1.msra.mxu0 %v352
        %452 = vmatprep.subr.mxu0 %v351
        %453 = vmatpush1.msra.mxu0 %v350
        %454 = vmatprep.subr.mxu0 %v349
        %455 = vmatpush1.msra.mxu0 %v348
        %456 = vmatprep.subr.mxu0 0.0
        %457 = vmatpush2.msra.mxu0 0.0
        %458 = vmatprep.subr.mxu0 0.0
        %459 = vmatpush2.msra.mxu0 0.0
        %460 = vmatprep.subr.mxu0 0.0
        %461 = vmatpush2.msra.mxu0 0.0
        %462 = vmatprep.subr.mxu0 0.0
        %463 = vmatpush2.msra.mxu0 0.0
        %464 = vmatprep.subr.mxu0 0.0
        %465 = vmatpush2.msra.mxu0 0.0
        %466 = vmatprep.subr.mxu0 0.0
        %467 = vmatpush2.msra.mxu0 0.0
        %468 = vmatprep.subr.mxu0 0.0
        %469 = vmatpush2.msra.mxu0 0.0
        %470 = vmatprep.subr.mxu0 0.0
        %471 = vmatpush2.msra.mxu0 0.0
        %472 = vmatprep.subr.mxu0 0.0
        %473 = vmatpush2.msra.mxu0 0.0
        %474 = vmatprep.subr.mxu0 0.0
        %475 = vmatpush2.msra.mxu0 0.0
        %476 = vmatprep.subr.mxu0 0.0
        %477 = vmatpush2.msra.mxu0 0.0
        %478 = vmatprep.subr.mxu0 0.0
        %479 = vmatpush2.msra.mxu0 0.0
        %480 = vmatprep.subr.mxu0 0.0
        %481 = vmatpush2.msra.mxu0 0.0
        %482 = vmatprep.subr.mxu0 0.0
        %483 = vmatpush2.msra.mxu0 0.0
        %484 = vmatprep.subr.mxu0 0.0
        %485 = vmatpush2.msra.mxu0 0.0
        %486 = vmatprep.subr.mxu0 0.0
        %487 = vmatpush2.msra.mxu0 0.0
        %488 = vmatprep.mubr.f32.mxu0 0.0
        %489 = vmatmul.mubr.f32.gmra.mxu0 %v408
        %v490 = vpop.f32.mrf.mxu0
        %v491 = vadd.f32 %v385, %v490
        %v492 = vpop.f32.mrf.mxu0
        %v493 = vadd.f32 %v389, %v492
        %494 = vdwg.mxu0
        %v495 = vmax.f32 %v491, 0.0
        %v496 = vmax.f32 %v493, 0.0
        %v497 = vld [vmem:[#allocation2] sm:$0xff]
        %v498 = vld [vmem:[#allocation2 + $0x8] sm:$0xff]
        %v499 = vld [vmem:[#allocation2 + $0x10] sm:$0xff]
        %v500 = vld [vmem:[#allocation2 + $0x18] sm:$0xff]
        %v501 = vld [vmem:[#allocation2 + $0x20] sm:$0xff]
        %v502 = vld [vmem:[#allocation2 + $0x28] sm:$0xff]
        %v503 = vld [vmem:[#allocation2 + $0x30] sm:$0xff]
        %v504 = vld [vmem:[#allocation2 + $0x38] sm:$0xff]
        %v505 = vld [vmem:[#allocation2 + $0x40] sm:$0xff]
        %v506 = vld [vmem:[#allocation2 + $0x48] sm:$0xff]
        %v507 = vld [vmem:[#allocation2 + $0x50] sm:$0xff]
        %v508 = vld [vmem:[#allocation2 + $0x58] sm:$0xff]
        %v509 = vld [vmem:[#allocation2 + $0x60] sm:$0xff]
        %v510 = vld [vmem:[#allocation2 + $0x68] sm:$0xff]
        %v511 = vld [vmem:[#allocation2 + $0x70] sm:$0xff]
        %v512 = vld [vmem:[#allocation2 + $0x78] sm:$0xff]
        %v513 = vld [vmem:[#allocation2 + $0x80] sm:$0xff]
        %v514 = vld [vmem:[#allocation2 + $0x88] sm:$0xff]
        %v515 = vld [vmem:[#allocation2 + $0x90] sm:$0xff]
        %v516 = vld [vmem:[#allocation2 + $0x98] sm:$0xff]
        %v517 = vld [vmem:[#allocation2 + $0xa0] sm:$0xff]
        %v518 = vld [vmem:[#allocation2 + $0xa8] sm:$0xff]
        %v519 = vld [vmem:[#allocation2 + $0xb0] sm:$0xff]
        %v520 = vld [vmem:[#allocation2 + $0xb8] sm:$0xff]
        %v521 = vld [vmem:[#allocation2 + $0xc0] sm:$0xff]
        %v522 = vld [vmem:[#allocation2 + $0xc8] sm:$0xff]
        %v523 = vld [vmem:[#allocation2 + $0xd0] sm:$0xff]
        %v524 = vld [vmem:[#allocation2 + $0xd8] sm:$0xff]
        %v525 = vld [vmem:[#allocation2 + $0xe0] sm:$0xff]
        %v526 = vld [vmem:[#allocation2 + $0xe8] sm:$0xff]
        %v527 = vld [vmem:[#allocation2 + $0xf0] sm:$0xff]
        %v528 = vld [vmem:[#allocation2 + $0xf8] sm:$0xff]
        %v529 = vld [vmem:[#allocation2 + $0x100] sm:$0xff]
        %v530 = vld [vmem:[#allocation2 + $0x108] sm:$0xff]
        %v531 = vld [vmem:[#allocation2 + $0x110] sm:$0xff]
        %v532 = vld [vmem:[#allocation2 + $0x118] sm:$0xff]
        %v533 = vld [vmem:[#allocation2 + $0x120] sm:$0xff]
        %v534 = vld [vmem:[#allocation2 + $0x128] sm:$0xff]
        %v535 = vld [vmem:[#allocation2 + $0x130] sm:$0xff]
        %v536 = vld [vmem:[#allocation2 + $0x138] sm:$0xff]
        %v537 = vld [vmem:[#allocation2 + $0x140] sm:$0xff]
        %v538 = vld [vmem:[#allocation2 + $0x148] sm:$0xff]
        %v539 = vld [vmem:[#allocation2 + $0x150] sm:$0xff]
        %v540 = vld [vmem:[#allocation2 + $0x158] sm:$0xff]
        %v541 = vld [vmem:[#allocation2 + $0x160] sm:$0xff]
        %v542 = vld [vmem:[#allocation2 + $0x168] sm:$0xff]
        %v543 = vld [vmem:[#allocation2 + $0x170] sm:$0xff]
        %v544 = vld [vmem:[#allocation2 + $0x178] sm:$0xff]
        %v545 = vld [vmem:[#allocation2 + $0x180] sm:$0xff]
        %v546 = vld [vmem:[#allocation2 + $0x188] sm:$0xff]
        %v547 = vld [vmem:[#allocation2 + $0x190] sm:$0xff]
        %v548 = vld [vmem:[#allocation2 + $0x198] sm:$0xff]
        %v549 = vld [vmem:[#allocation2 + $0x1a0] sm:$0xff]
        %v550 = vld [vmem:[#allocation2 + $0x1a8] sm:$0xff]
        %v551 = vld [vmem:[#allocation2 + $0x1b0] sm:$0xff]
        %v552 = vld [vmem:[#allocation2 + $0x1b8] sm:$0xff]
        %v553 = vld [vmem:[#allocation2 + $0x1c0] sm:$0xff]
        %v554 = vld [vmem:[#allocation2 + $0x1c8] sm:$0xff]
        %v555 = vld [vmem:[#allocation2 + $0x1d0] sm:$0xff]
        %v556 = vld [vmem:[#allocation2 + $0x1d8] sm:$0xff]
        %v557 = vld [vmem:[#allocation2 + $0x1e0] sm:$0xff]
        %v558 = vld [vmem:[#allocation2 + $0x1e8] sm:$0xff]
        %v559 = vld [vmem:[#allocation2 + $0x1f0] sm:$0xff]
        %v560 = vld [vmem:[#allocation2 + $0x1f8] sm:$0xff]
        %v561 = vld [vmem:[%s4] sm:$0x3]
        %v563 = vlaneseq
        %v564 = vshrl.u32 %v563, 7
        %v565 = vsub.s32 0, %v564
        %v566 = vrot.slane %v561, %v565
        %v567 = vlaneseq
        %v568 = vshrl.u32 %v567, 7
        %v569 = vsub.s32 1, %v568
        %v570 = vrot.slane %v561, %v569
        %573 = vmatprep.subr.mxu0 %v528
        %574 = vmatpush1.msra.mxu0 %v527
        %575 = vmatprep.subr.mxu0 %v526
        %576 = vmatpush1.msra.mxu0 %v525
        %577 = vmatprep.subr.mxu0 %v524
        %578 = vmatpush1.msra.mxu0 %v523
        %579 = vmatprep.subr.mxu0 %v522
        %580 = vmatpush1.msra.mxu0 %v521
        %581 = vmatprep.subr.mxu0 %v520
        %582 = vmatpush1.msra.mxu0 %v519
        %583 = vmatprep.subr.mxu0 %v518
        %584 = vmatpush1.msra.mxu0 %v517
        %585 = vmatprep.subr.mxu0 %v516
        %586 = vmatpush1.msra.mxu0 %v515
        %587 = vmatprep.subr.mxu0 %v514
        %588 = vmatpush1.msra.mxu0 %v513
        %589 = vmatprep.subr.mxu0 %v512
        %590 = vmatpush1.msra.mxu0 %v511
        %591 = vmatprep.subr.mxu0 %v510
        %592 = vmatpush1.msra.mxu0 %v509
        %593 = vmatprep.subr.mxu0 %v508
        %594 = vmatpush1.msra.mxu0 %v507
        %595 = vmatprep.subr.mxu0 %v506
        %596 = vmatpush1.msra.mxu0 %v505
        %597 = vmatprep.subr.mxu0 %v504
        %598 = vmatpush1.msra.mxu0 %v503
        %599 = vmatprep.subr.mxu0 %v502
        %600 = vmatpush1.msra.mxu0 %v501
        %601 = vmatprep.subr.mxu0 %v500
        %602 = vmatpush1.msra.mxu0 %v499
        %603 = vmatprep.subr.mxu0 %v498
        %604 = vmatpush1.msra.mxu0 %v497
        %605 = vmatprep.subr.mxu0 %v560
        %606 = vmatpush2.msra.mxu0 %v559
        %607 = vmatprep.subr.mxu0 %v558
        %608 = vmatpush2.msra.mxu0 %v557
        %609 = vmatprep.subr.mxu0 %v556
        %610 = vmatpush2.msra.mxu0 %v555
        %611 = vmatprep.subr.mxu0 %v554
        %612 = vmatpush2.msra.mxu0 %v553
        %613 = vmatprep.subr.mxu0 %v552
        %614 = vmatpush2.msra.mxu0 %v551
        %615 = vmatprep.subr.mxu0 %v550
        %616 = vmatpush2.msra.mxu0 %v549
        %617 = vmatprep.subr.mxu0 %v548
        %618 = vmatpush2.msra.mxu0 %v547
        %619 = vmatprep.subr.mxu0 %v546
        %620 = vmatpush2.msra.mxu0 %v545
        %621 = vmatprep.subr.mxu0 %v544
        %622 = vmatpush2.msra.mxu0 %v543
        %623 = vmatprep.subr.mxu0 %v542
        %624 = vmatpush2.msra.mxu0 %v541
        %625 = vmatprep.subr.mxu0 %v540
        %626 = vmatpush2.msra.mxu0 %v539
        %627 = vmatprep.subr.mxu0 %v538
        %628 = vmatpush2.msra.mxu0 %v537
        %629 = vmatprep.subr.mxu0 %v536
        %630 = vmatpush2.msra.mxu0 %v535
        %631 = vmatprep.subr.mxu0 %v534
        %632 = vmatpush2.msra.mxu0 %v533
        %633 = vmatprep.subr.mxu0 %v532
        %634 = vmatpush2.msra.mxu0 %v531
        %635 = vmatprep.subr.mxu0 %v530
        %636 = vmatpush2.msra.mxu0 %v529
        %637 = vmatprep.mubr.f32.mxu0 %v496
        %638 = vmatmul.mubr.f32.gmra.mxu0 %v495
        %v639 = vpop.f32.mrf.mxu0
        %v640 = vadd.f32 %v566, %v639
        %v641 = vpop.f32.mrf.mxu0
        %v642 = vadd.f32 %v570, %v641
        %643 = vdwg.mxu0
        %v644 = vmax.f32 %v640, 0.0
        %v645 = vmax.f32 %v642, 0.0
        %v646 = vld [vmem:[#allocation5] sm:$0xff]
        %v647 = vld [vmem:[#allocation5 + $0x8] sm:$0xff]
        %v648 = vld [vmem:[#allocation5 + $0x10] sm:$0xff]
        %v649 = vld [vmem:[#allocation5 + $0x18] sm:$0xff]
        %v650 = vld [vmem:[#allocation5 + $0x20] sm:$0xff]
        %v651 = vld [vmem:[#allocation5 + $0x28] sm:$0xff]
        %v652 = vld [vmem:[#allocation5 + $0x30] sm:$0xff]
        %v653 = vld [vmem:[#allocation5 + $0x38] sm:$0xff]
        %v654 = vld [vmem:[#allocation5 + $0x40] sm:$0xff]
        %v655 = vld [vmem:[#allocation5 + $0x48] sm:$0xff]
        %v656 = vld [vmem:[#allocation5 + $0x50] sm:$0xff]
        %v657 = vld [vmem:[#allocation5 + $0x58] sm:$0xff]
        %v658 = vld [vmem:[#allocation5 + $0x60] sm:$0xff]
        %v659 = vld [vmem:[#allocation5 + $0x68] sm:$0xff]
        %v660 = vld [vmem:[#allocation5 + $0x70] sm:$0xff]
        %v661 = vld [vmem:[#allocation5 + $0x78] sm:$0xff]
        %v662 = vld [vmem:[#allocation5 + $0x80] sm:$0xff]
        %v663 = vld [vmem:[#allocation5 + $0x88] sm:$0xff]
        %v664 = vld [vmem:[#allocation5 + $0x90] sm:$0xff]
        %v665 = vld [vmem:[#allocation5 + $0x98] sm:$0xff]
        %v666 = vld [vmem:[#allocation5 + $0xa0] sm:$0xff]
        %v667 = vld [vmem:[#allocation5 + $0xa8] sm:$0xff]
        %v668 = vld [vmem:[#allocation5 + $0xb0] sm:$0xff]
        %v669 = vld [vmem:[#allocation5 + $0xb8] sm:$0xff]
        %v670 = vld [vmem:[#allocation5 + $0xc0] sm:$0xff]
        %v671 = vld [vmem:[#allocation5 + $0xc8] sm:$0xff]
        %v672 = vld [vmem:[#allocation5 + $0xd0] sm:$0xff]
        %v673 = vld [vmem:[#allocation5 + $0xd8] sm:$0xff]
        %v674 = vld [vmem:[#allocation5 + $0xe0] sm:$0xff]
        %v675 = vld [vmem:[#allocation5 + $0xe8] sm:$0xff]
        %v676 = vld [vmem:[#allocation5 + $0xf0] sm:$0xff]
        %v677 = vld [vmem:[#allocation5 + $0xf8] sm:$0xff]
        %v678 = vld [vmem:[#allocation5 + $0x100] sm:$0xff]
        %v679 = vld [vmem:[#allocation5 + $0x108] sm:$0xff]
        %v680 = vld [vmem:[#allocation5 + $0x110] sm:$0xff]
        %v681 = vld [vmem:[#allocation5 + $0x118] sm:$0xff]
        %v682 = vld [vmem:[#allocation5 + $0x120] sm:$0xff]
        %v683 = vld [vmem:[#allocation5 + $0x128] sm:$0xff]
        %v684 = vld [vmem:[#allocation5 + $0x130] sm:$0xff]
        %v685 = vld [vmem:[#allocation5 + $0x138] sm:$0xff]
        %v686 = vld [vmem:[#allocation5 + $0x140] sm:$0xff]
        %v687 = vld [vmem:[#allocation5 + $0x148] sm:$0xff]
        %v688 = vld [vmem:[#allocation5 + $0x150] sm:$0xff]
        %v689 = vld [vmem:[#allocation5 + $0x158] sm:$0xff]
        %v690 = vld [vmem:[#allocation5 + $0x160] sm:$0xff]
        %v691 = vld [vmem:[#allocation5 + $0x168] sm:$0xff]
        %v692 = vld [vmem:[#allocation5 + $0x170] sm:$0xff]
        %v693 = vld [vmem:[#allocation5 + $0x178] sm:$0xff]
        %v694 = vld [vmem:[#allocation5 + $0x180] sm:$0xff]
        %v695 = vld [vmem:[#allocation5 + $0x188] sm:$0xff]
        %v696 = vld [vmem:[#allocation5 + $0x190] sm:$0xff]
        %v697 = vld [vmem:[#allocation5 + $0x198] sm:$0xff]
        %v698 = vld [vmem:[#allocation5 + $0x1a0] sm:$0xff]
        %v699 = vld [vmem:[#allocation5 + $0x1a8] sm:$0xff]
        %v700 = vld [vmem:[#allocation5 + $0x1b0] sm:$0xff]
        %v701 = vld [vmem:[#allocation5 + $0x1b8] sm:$0xff]
        %v702 = vld [vmem:[#allocation5 + $0x1c0] sm:$0xff]
        %v703 = vld [vmem:[#allocation5 + $0x1c8] sm:$0xff]
        %v704 = vld [vmem:[#allocation5 + $0x1d0] sm:$0xff]
        %v705 = vld [vmem:[#allocation5 + $0x1d8] sm:$0xff]
        %v706 = vld [vmem:[#allocation5 + $0x1e0] sm:$0xff]
        %v707 = vld [vmem:[#allocation5 + $0x1e8] sm:$0xff]
        %v708 = vld [vmem:[#allocation5 + $0x1f0] sm:$0xff]
        %v709 = vld [vmem:[#allocation5 + $0x1f8] sm:$0xff]
        %v710 = vld [vmem:[%s6] sm:$0x3]
        %v712 = vlaneseq
        %v713 = vshrl.u32 %v712, 7
        %v714 = vsub.s32 0, %v713
        %v715 = vrot.slane %v710, %v714
        %v716 = vlaneseq
        %v717 = vshrl.u32 %v716, 7
        %v718 = vsub.s32 1, %v717
        %v719 = vrot.slane %v710, %v718
        %722 = vmatprep.subr.mxu0 %v677
        %723 = vmatpush1.msra.mxu0 %v676
        %724 = vmatprep.subr.mxu0 %v675
        %725 = vmatpush1.msra.mxu0 %v674
        %726 = vmatprep.subr.mxu0 %v673
        %727 = vmatpush1.msra.mxu0 %v672
        %728 = vmatprep.subr.mxu0 %v671
        %729 = vmatpush1.msra.mxu0 %v670
        %730 = vmatprep.subr.mxu0 %v669
        %731 = vmatpush1.msra.mxu0 %v668
        %732 = vmatprep.subr.mxu0 %v667
        %733 = vmatpush1.msra.mxu0 %v666
        %734 = vmatprep.subr.mxu0 %v665
        %735 = vmatpush1.msra.mxu0 %v664
        %736 = vmatprep.subr.mxu0 %v663
        %737 = vmatpush1.msra.mxu0 %v662
        %738 = vmatprep.subr.mxu0 %v661
        %739 = vmatpush1.msra.mxu0 %v660
        %740 = vmatprep.subr.mxu0 %v659
        %741 = vmatpush1.msra.mxu0 %v658
        %742 = vmatprep.subr.mxu0 %v657
        %743 = vmatpush1.msra.mxu0 %v656
        %744 = vmatprep.subr.mxu0 %v655
        %745 = vmatpush1.msra.mxu0 %v654
        %746 = vmatprep.subr.mxu0 %v653
        %747 = vmatpush1.msra.mxu0 %v652
        %748 = vmatprep.subr.mxu0 %v651
        %749 = vmatpush1.msra.mxu0 %v650
        %750 = vmatprep.subr.mxu0 %v649
        %751 = vmatpush1.msra.mxu0 %v648
        %752 = vmatprep.subr.mxu0 %v647
        %753 = vmatpush1.msra.mxu0 %v646
        %754 = vmatprep.subr.mxu0 %v709
        %755 = vmatpush2.msra.mxu0 %v708
        %756 = vmatprep.subr.mxu0 %v707
        %757 = vmatpush2.msra.mxu0 %v706
        %758 = vmatprep.subr.mxu0 %v705
        %759 = vmatpush2.msra.mxu0 %v704
        %760 = vmatprep.subr.mxu0 %v703
        %761 = vmatpush2.msra.mxu0 %v702
        %762 = vmatprep.subr.mxu0 %v701
        %763 = vmatpush2.msra.mxu0 %v700
        %764 = vmatprep.subr.mxu0 %v699
        %765 = vmatpush2.msra.mxu0 %v698
        %766 = vmatprep.subr.mxu0 %v697
        %767 = vmatpush2.msra.mxu0 %v696
        %768 = vmatprep.subr.mxu0 %v695
        %769 = vmatpush2.msra.mxu0 %v694
        %770 = vmatprep.subr.mxu0 %v693
        %771 = vmatpush2.msra.mxu0 %v692
        %772 = vmatprep.subr.mxu0 %v691
        %773 = vmatpush2.msra.mxu0 %v690
        %774 = vmatprep.subr.mxu0 %v689
        %775 = vmatpush2.msra.mxu0 %v688
        %776 = vmatprep.subr.mxu0 %v687
        %777 = vmatpush2.msra.mxu0 %v686
        %778 = vmatprep.subr.mxu0 %v685
        %779 = vmatpush2.msra.mxu0 %v684
        %780 = vmatprep.subr.mxu0 %v683
        %781 = vmatpush2.msra.mxu0 %v682
        %782 = vmatprep.subr.mxu0 %v681
        %783 = vmatpush2.msra.mxu0 %v680
        %784 = vmatprep.subr.mxu0 %v679
        %785 = vmatpush2.msra.mxu0 %v678
        %786 = vmatprep.mubr.f32.mxu0 %v645
        %787 = vmatmul.mubr.f32.gmra.mxu0 %v644
        %v788 = vpop.f32.mrf.mxu0
        %v789 = vadd.f32 %v715, %v788
        %v790 = vpop.f32.mrf.mxu0
        %v791 = vadd.f32 %v719, %v790
        %792 = vdwg.mxu0
        %793 = vst [vmem:[%s323] sm:$0xff] %v789
        %794 = vst [vmem:[%s323 + $0x8] sm:$0xff] %v791
        %s795 = sand.u32 %s199, 1
        %s796 = scalar_lea.sflag [#allocation4], %s795
        %s797 = sand.u32 %s199, 1
        %s798 = smul.addr %s797, 16
        %s799 = scalar_lea.vmem [#allocation7], %s798
        // Predicated region
        $region57: #{tpu_custom_call.1} parent=47 // pred_check
          %p800 = pneg %p209
        $region58: #{tpu_custom_call.1} parent=47 // pred_check_branch
          %802 = sbr.rel (%p800) target = $region60
        $region59: #{tpu_custom_call.1} parent=47 // pred_region
          %s804 = ssub.s32 256, 256
          %805 = vsyncadd %s796, %s804
          %s806 = smul.addr %s28, 2
          %s807 = smul.addr %s27, 2
          %s808 = sadd.s32 %s806, %s807
          %s809 = smul.addr %s808, 128
          %s810 = scalar_lea.hbm %s7, %s809
          %s812 = sshll.u32 %s799, 4
          %s813 = int_to_ptr.vmem [resolvable:$true] %s812
          %815 = dma.vmem_to_hbm [thread:$0]  %s813, 256, %s810, %s796
        $region60: #{tpu_custom_call.1} parent=47 // pred_fallthru
          _
      $region48: #{tpu_custom_call.1} parent=5 // pred_fallthru
        _
      %p816 = scmp.le.s32.totalorder 2, %s18
      // Predicated region
      $region61: #{tpu_custom_call.1} parent=5 // pred_check
        %p817 = pneg %p816
      $region62: #{tpu_custom_call.1} parent=5 // pred_check_branch
        %819 = sbr.rel (%p817) target = $region64
      $region63: #{tpu_custom_call.1} parent=5 // pred_region
        %s820 = ssub.s32 %s18, 2
        // Predicated region
        $region65: #{tpu_custom_call.1} parent=63 // pred_check
          %p821 = pneg %p215
        $region66: #{tpu_custom_call.1} parent=63 // pred_check_branch
          %823 = sbr.rel (%p821) target = $region68
        $region67: #{tpu_custom_call.1} parent=63 // pred_region
          %s824 = sand.u32 %s200, 1
          %s825 = scalar_lea.sflag [#allocation4], %s824
          %s826 = sand.u32 %s200, 1
          %s827 = smul.addr %s826, 16
          %s828 = scalar_lea.vmem [#allocation7], %s827
          %829 = dma.done %s825, 256
        $region68: #{tpu_custom_call.1} parent=63 // pred_fallthru
          _
      $region64: #{tpu_custom_call.1} parent=5 // pred_fallthru
        _
    $region6: #{tpu_custom_call.1} parent=1 // loop_footer
      %s22 = sadd.s32 1, %s18
    $region7: #{tpu_custom_call.1} parent=1 // loop_footer_branch
      %17 = sbr.rel target = $region3
    $region8: #{tpu_custom_call.1} parent=1 // loop_exit
      _
    %830 = vsyncpa [#allocation3], 1
    %s831 = scalar_lea.sflag [#allocation3], 1
    %832 = vsyncpa %s831, 1
    %833 = vsyncpa [#allocation6], 1
    %834 = vsyncpa [#allocation4], 1
    %s835 = scalar_lea.sflag [#allocation4], 1
    %836 = vsyncpa %s835, 1

</llo_original>
